<compile_context>
chip_gen: v7x
topology: tpu7x:2x2x1
jax: 0.10.0
libtpu: 0.0.40
codegen_flags: <defaults>
</compile_context>

<pallas_src>
import math
import functools

import jax
import jax.numpy as jnp
import numpy as np
from jax.experimental import pallas as pl
from jax.experimental.pallas import tpu as pltpu


# Row indices of the packed (NUM_VEC, d_model) parameter-vector array.
_B_EMB, _B_SO, _G1, _BE1, _B_Q, _B_CO, _G2, _BE2, _B_FF2, _G3, _BE3 = range(11)
_NUM_VEC = 11


# ----------------------------------------------------------------------------
# Pallas kernel: one grid step == one batch element, full decoder layer inside.
# ----------------------------------------------------------------------------
def _decoder_layer_kernel(x_ref, y_ref,
                          w_emb, w_qkv, w_so, w_kv, w_q, w_co, w_ff1, w_ff2,
                          b_qkv, b_kv, b_ff1, vecs,
                          out_ref, vals_scr, *, num_heads):
    f32 = jnp.float32
    bf16 = jnp.bfloat16
    H = num_heads

    x = x_ref[...]                      # (Sx, d_model)  encoder output
    y_in = y_ref[...]                   # (Sy, d_data)   decoder input
    d_model = x.shape[-1]
    Sy = y_in.shape[0]
    hd = d_model // H

    def vec(i):                         # one packed (1, d_model) parameter row
        return vecs[pl.ds(i, 1), :]

    def mm(a, w_ref, bias):
        # bf16 MXU operands, f32 accumulation.
        out = jnp.dot(a.astype(bf16), w_ref[...], preferred_element_type=f32)
        return out + bias

    def softmax_last(s):
        m = jnp.max(s, axis=-1, keepdims=True)
        e = jnp.exp(s - m)
        return e * pl.reciprocal(jnp.sum(e, axis=-1, keepdims=True), approx=True)

    def layer_norm(v, g_idx, b_idx):
        mean = jnp.mean(v, axis=-1, keepdims=True)
        c = v - mean
        var = jnp.mean(c * c, axis=-1, keepdims=True)
        return vec(g_idx) * (c * jax.lax.rsqrt(var + 1e-5)) + vec(b_idx)

    def attention_to_scratch(q_wide, kv_wide, k_off, v_off):
        # Per-head attention (1/sqrt(hd) already folded into the Q weights).
        # Results land in vals_scr laid out exactly like torch's (H, Sq, hd)
        # flattened to (H*Sq, hd).
        for h in range(H):
            q_h = q_wide[:, h * hd:(h + 1) * hd]
            k_h = kv_wide[:, k_off + h * hd:k_off + (h + 1) * hd]
            v_h = kv_wide[:, v_off + h * hd:v_off + (h + 1) * hd]
            s = jnp.einsum('qe,ke->qk', q_h.astype(bf16), k_h.astype(bf16),
                           preferred_element_type=f32)
            p = softmax_last(s)
            vals_h = jnp.einsum('qk,ke->qe', p.astype(bf16), v_h.astype(bf16),
                                preferred_element_type=f32)
            vals_scr[h * Sy:(h + 1) * Sy, :] = vals_h

    def scrambled_out_proj(w_o_ref, b_row):
        # torch "values.reshape(B,S,H*hd)" (heads NOT un-permuted): H strided
        # sublane reads + one lane concat, then ONE K=d_model matmul.
        cols = [vals_scr[pl.ds(j, Sy, stride=H), :] for j in range(H)]
        scrambled = jnp.concatenate(cols, axis=-1)            # (Sy, d_model)
        return mm(scrambled, w_o_ref, b_row)

    # --- target embedding -----------------------------------------------
    y0 = mm(y_in, w_emb, vec(_B_EMB))                         # (Sy, d_model)

    # --- self attention (reference drops the mask) + dropout1 (identity) --
    qkv = mm(y0, w_qkv, b_qkv[...])                           # (Sy, 3*d_model)
    attention_to_scratch(qkv, qkv, k_off=d_model, v_off=2 * d_model)
    y1 = layer_norm(scrambled_out_proj(w_so, vec(_B_SO)) + y0, _G1, _BE1)

    # --- cross attention: k,v from x; q from y1 + dropout2 (identity) -----
    kv = mm(x, w_kv, b_kv[...])                               # (Sx, 2*d_model)
    q_c = mm(y1, w_q, vec(_B_Q))                              # (Sy, d_model)
    attention_to_scratch(q_c, kv, k_off=0, v_off=d_model)
    y2 = layer_norm(scrambled_out_proj(w_co, vec(_B_CO)) + y1, _G2, _BE2)

    # --- position-wise FFN + dropout3 (identity) --------------------------
    h_mid = jnp.maximum(mm(y2, w_ff1, b_ff1[...]), 0.0)
    ff = mm(h_mid, w_ff2, vec(_B_FF2))
    y3 = layer_norm(ff + y2, _G3, _BE3)

    out_ref[...] = y3.astype(out_ref.dtype)


# ----------------------------------------------------------------------------
# Wrapper: parameter re-layout (plain-JAX glue) + pallas_call
# ----------------------------------------------------------------------------
def decoder_layer_pallas(x, y, decoder_mask, params, num_heads):
    del decoder_mask  # never applied by the reference forward (see module docstring)
    B, Sx, d_model = x.shape
    _, Sy, d_data = y.shape
    H = num_heads
    hd = d_model // H
    p = params
    bf16 = jnp.bfloat16
    f32 = jnp.float32
    scale = 1.0 / math.sqrt(hd)

    # Fused projections -> head-major column order [Q|K|V] / [K|V], so the
    # kernel does ONE wide matmul per projection and splits heads with cheap
    # static lane slices.  The 1/sqrt(hd) attention scale is folded into the
    # Q columns / biases here (exact; removes a VPU multiply on the scores).
    qkv_scale = jnp.concatenate([jnp.full((d_model,), scale, f32),
                                 jnp.ones((2 * d_model,), f32)])
    w_qkv_p = (p["w_qkv"].reshape(d_model, H, 3, hd).transpose(0, 2, 1, 3)
               .reshape(d_model, 3 * d_model)) * qkv_scale
    b_qkv_p = (p["b_qkv"].reshape(H, 3, hd).transpose(1, 0, 2)
               .reshape(1, 3 * d_model)) * qkv_scale
    w_kv_p = (p["w_kv"].reshape(d_model, H, 2, hd).transpose(0, 2, 1, 3)
              .reshape(d_model, 2 * d_model))
    b_kv_p = p["b_kv"].reshape(H, 2, hd).transpose(1, 0, 2).reshape(1, 2 * d_model)
    w_q_s = p["w_q"] * scale
    b_q_s = p["b_q"] * scale

    # All d_model-wide bias / LayerNorm vectors packed into one array.
    vec_rows = [p["b_emb"], p["b_so"], p["g1"], p["be1"], b_q_s, p["b_co"],
                p["g2"], p["be2"], p["b_ff2"], p["g3"], p["be3"]]
    vecs = jnp.concatenate([r.reshape(1, d_model).astype(f32) for r in vec_rows],
                           axis=0)
    assert vecs.shape[0] == _NUM_VEC

    weights = [
        p["w_emb"].astype(bf16),      # (d_data, d_model)
        w_qkv_p.astype(bf16),         # (d_model, 3*d_model)  [Q|K|V] head-major
        p["w_so"].astype(bf16),       # (d_model, d_model)
        w_kv_p.astype(bf16),          # (d_model, 2*d_model)  [K|V]  head-major
        w_q_s.astype(bf16),           # (d_model, d_model)    (pre-scaled)
        p["w_co"].astype(bf16),       # (d_model, d_model)
        p["w_ff1"].astype(bf16),      # (d_model, ffn_hidden)
        p["w_ff2"].astype(bf16),      # (ffn_hidden, d_model)
        b_qkv_p.astype(f32),          # (1, 3*d_model)
        b_kv_p.astype(f32),           # (1, 2*d_model)
        p["b_ff1"].astype(f32),       # (1, ffn_hidden)
        vecs,                         # (_NUM_VEC, d_model)
    ]

    def const_spec(arr):
        # TODO(synk): on v7x, single-buffer these constant-index weights
        # (pipeline_mode=pl.Buffered(1)) and K-tile the FFN weights instead of
        # keeping them fully VMEM-resident at production d_model/ffn sizes.
        nd = arr.ndim
        return pl.BlockSpec(arr.shape, lambda b, _nd=nd: (0,) * _nd)

    in_specs = [
        pl.BlockSpec((None, Sx, d_model), lambda b: (b, 0, 0)),
        pl.BlockSpec((None, Sy, d_data), lambda b: (b, 0, 0)),
    ] + [const_spec(w) for w in weights]

    kernel = functools.partial(_decoder_layer_kernel, num_heads=H)

    return pl.pallas_call(
        kernel,
        out_shape=jax.ShapeDtypeStruct((B, Sy, d_model), jnp.float32),
        grid=(B,),
        in_specs=in_specs,
        out_specs=pl.BlockSpec((None, Sy, d_model), lambda b: (b, 0, 0)),
        scratch_shapes=[pltpu.VMEM((H * Sy, hd), jnp.float32)],
        compiler_params=pltpu.CompilerParams(
            dimension_semantics=("parallel",),   # batch shards across v7x's 2 TCs
            vmem_limit_bytes=48 * 1024 * 1024),  # >32MiB default, <=64MiB (v7x)
    )(x, y, *weights)


# ----------------------------------------------------------------------------
# Deterministic parameter init (torch nn.Linear-style uniform bounds)
# ----------------------------------------------------------------------------
def init_params(key, d_model, d_data, ffn_hidden, num_heads):
    del num_heads
    ks = jax.random.split(key, 8)

    def lin(k, fan_in, fan_out):
        k1, k2 = jax.random.split(k)
        bound = 1.0 / math.sqrt(fan_in)
        w = jax.random.uniform(k1, (fan_in, fan_out), jnp.float32, -bound, bound)
        b = jax.random.uniform(k2, (1, fan_out), jnp.float32, -bound, bound)
        return w, b

    p = {}
    p["w_emb"], p["b_emb"] = lin(ks[0], d_data, d_model)
    p["w_qkv"], p["b_qkv"] = lin(ks[1], d_model, 3 * d_model)
    p["w_so"], p["b_so"] = lin(ks[2], d_model, d_model)
    p["w_kv"], p["b_kv"] = lin(ks[3], d_model, 2 * d_model)
    p["w_q"], p["b_q"] = lin(ks[4], d_model, d_model)
    p["w_co"], p["b_co"] = lin(ks[5], d_model, d_model)
    p["w_ff1"], p["b_ff1"] = lin(ks[6], d_model, ffn_hidden)
    p["w_ff2"], p["b_ff2"] = lin(ks[7], ffn_hidden, d_model)
    for i in ("1", "2", "3"):
        p["g" + i] = jnp.ones((1, d_model), jnp.float32)
        p["be" + i] = jnp.zeros((1, d_model), jnp.float32)
    return p


# ----------------------------------------------------------------------------
# Pure-JAX reference (mirrors the PyTorch code exactly, incl. the scrambled
# reshape and the dropped mask) — correctness check only.
# ----------------------------------------------------------------------------
def reference_decoder_layer(x, y, p, num_heads):
    H = num_heads
    d_model = p["w_so"].shape[0]
    hd = d_model // H
    B, Sx, _ = x.shape
    _, Sy, _ = y.shape

    def ln(v, g, b):
        m = v.mean(-1, keepdims=True)
        var = ((v - m) ** 2).mean(-1, keepdims=True)
        return g * (v - m) / jnp.sqrt(var + 1e-5) + b

    def sdp(q, k, v):
        s = jnp.matmul(q, jnp.swapaxes(k, -1, -2)) / math.sqrt(q.shape[-1])
        a = jax.nn.softmax(s, axis=-1)
        return jnp.matmul(a, v)

    y1 = y @ p["w_emb"] + p["b_emb"]
    resid = y1
    qkv = (y1 @ p["w_qkv"] + p["b_qkv"]).reshape(B, Sy, H, 3 * hd).transpose(0, 2, 1, 3)
    q, k, v = qkv[..., :hd], qkv[..., hd:2 * hd], qkv[..., 2 * hd:]
    vals = sdp(q, k, v).reshape(B, Sy, H * hd)
    y1 = ln(vals @ p["w_so"] + p["b_so"] + resid, p["g1"], p["be1"])

    resid = y1
    kv = (x @ p["w_kv"] + p["b_kv"]).reshape(B, Sx, H, 2 * hd).transpose(0, 2, 1, 3)
    k2, v2 = kv[..., :hd], kv[..., hd:]
    q2 = (y1 @ p["w_q"] + p["b_q"]).reshape(B, Sy, H, hd).transpose(0, 2, 1, 3)
    vals = sdp(q2, k2, v2).reshape(B, Sy, H * hd)
    y1 = ln(vals @ p["w_co"] + p["b_co"] + resid, p["g2"], p["be2"])

    resid = y1
    ff = jnp.maximum(y1 @ p["w_ff1"] + p["b_ff1"], 0.0) @ p["w_ff2"] + p["b_ff2"]
    return ln(ff + resid, p["g3"], p["be3"])


if __name__ == "__main__":
    B, Sx, Sy = 2, 8, 8
    d_model, d_data, ffn_hidden, num_heads = 32, 16, 64, 4

    key = jax.random.PRNGKey(0)
    kx, ky, kp = jax.random.split(key, 3)
    x = jax.random.normal(kx, (B, Sx, d_model), jnp.float32)   # encoder output
    y = jax.random.normal(ky, (B, Sy, d_data), jnp.float32)    # decoder input
    decoder_mask = jnp.zeros((Sy, Sy), jnp.float32)            # unused (see notes)

    params = init_params(kp, d_model, d_data, ffn_hidden, num_heads)
    # The kernel feeds bf16 weights to the MXU; round the params once here so
    # the f32 reference uses the identical weight values (apples-to-apples).
    params = {k: v.astype(jnp.bfloat16).astype(jnp.float32)
              for k, v in params.items()}

    out = decoder_layer_pallas(x, y, decoder_mask, params, num_heads)
    out = jax.block_until_ready(out)

    ref = reference_decoder_layer(x, y, params, num_heads)
    # bf16 MXU operands (f32 accumulation) + approx softmax reciprocal; same
    # tolerance as the previously-passing version.
    np.testing.assert_allclose(np.asarray(out), np.asarray(ref), rtol=2e-2, atol=2e-2)
    print("KERNEL_OK")
</pallas_src>

<mosaic_0001>
module attributes {stable_mosaic.version = 11 : i64} {
  func.func @_decoder_layer_kernel(%arg0: i32, %arg1: memref<1x8x32xf32, #tpu.memory_space<vmem>>, %arg2: memref<1x8x16xf32, #tpu.memory_space<vmem>>, %arg3: memref<16x32xbf16, #tpu.memory_space<vmem>>, %arg4: memref<32x96xbf16, #tpu.memory_space<vmem>>, %arg5: memref<32x32xbf16, #tpu.memory_space<vmem>>, %arg6: memref<32x64xbf16, #tpu.memory_space<vmem>>, %arg7: memref<32x32xbf16, #tpu.memory_space<vmem>>, %arg8: memref<32x32xbf16, #tpu.memory_space<vmem>>, %arg9: memref<32x64xbf16, #tpu.memory_space<vmem>>, %arg10: memref<64x32xbf16, #tpu.memory_space<vmem>>, %arg11: memref<1x96xf32, #tpu.memory_space<vmem>>, %arg12: memref<1x64xf32, #tpu.memory_space<vmem>>, %arg13: memref<1x64xf32, #tpu.memory_space<vmem>>, %arg14: memref<11x32xf32, #tpu.memory_space<vmem>>, %arg15: memref<1x8x32xf32, #tpu.memory_space<vmem>>, %arg16: memref<32x8xf32, #tpu.memory_space<vmem>>) attributes {dimension_semantics = [#tpu.dimension_semantics<parallel>], iteration_bounds = array<i64: 2>, scalar_prefetch = 0 : i64, scratch_operands = 1 : i64, tpu.core_type = #tpu.core_type<tc>, window_params = [{transform_indices = @transform_0, window_bounds = array<i64: 1, 8, 32>}, {transform_indices = @transform_1, window_bounds = array<i64: 1, 8, 16>}, {pipeline_mode = #tpu.pipeline_mode<synchronous>, transform_indices = @transform_2, window_bounds = array<i64: 16, 32>}, {pipeline_mode = #tpu.pipeline_mode<synchronous>, transform_indices = @transform_3, window_bounds = array<i64: 32, 96>}, {pipeline_mode = #tpu.pipeline_mode<synchronous>, transform_indices = @transform_4, window_bounds = array<i64: 32, 32>}, {pipeline_mode = #tpu.pipeline_mode<synchronous>, transform_indices = @transform_5, window_bounds = array<i64: 32, 64>}, {pipeline_mode = #tpu.pipeline_mode<synchronous>, transform_indices = @transform_6, window_bounds = array<i64: 32, 32>}, {pipeline_mode = #tpu.pipeline_mode<synchronous>, transform_indices = @transform_7, window_bounds = array<i64: 32, 32>}, {pipeline_mode = #tpu.pipeline_mode<synchronous>, transform_indices = @transform_8, window_bounds = array<i64: 32, 64>}, {pipeline_mode = #tpu.pipeline_mode<synchronous>, transform_indices = @transform_9, window_bounds = array<i64: 64, 32>}, {pipeline_mode = #tpu.pipeline_mode<synchronous>, transform_indices = @transform_10, window_bounds = array<i64: 1, 96>}, {pipeline_mode = #tpu.pipeline_mode<synchronous>, transform_indices = @transform_11, window_bounds = array<i64: 1, 64>}, {pipeline_mode = #tpu.pipeline_mode<synchronous>, transform_indices = @transform_12, window_bounds = array<i64: 1, 64>}, {pipeline_mode = #tpu.pipeline_mode<synchronous>, transform_indices = @transform_13, window_bounds = array<i64: 11, 32>}, {transform_indices = @transform_14, window_bounds = array<i64: 1, 8, 32>}]} {
    %c0 = arith.constant 0 : index
    %c0_0 = arith.constant 0 : index
    %c0_1 = arith.constant 0 : index
    %0 = vector.load %arg1[%c0, %c0_0, %c0_1] : memref<1x8x32xf32, #tpu.memory_space<vmem>>, vector<1x8x32xf32>
    %1 = vector.shape_cast %0 : vector<1x8x32xf32> to vector<8x32xf32>
    %c0_2 = arith.constant 0 : index
    %c0_3 = arith.constant 0 : index
    %c0_4 = arith.constant 0 : index
    %2 = vector.load %arg2[%c0_2, %c0_3, %c0_4] : memref<1x8x16xf32, #tpu.memory_space<vmem>>, vector<1x8x16xf32>
    %3 = vector.shape_cast %2 : vector<1x8x16xf32> to vector<8x16xf32>
    %c0_5 = arith.constant 0 : index
    %c0_6 = arith.constant 0 : index
    %4 = vector.load %arg14[%c0_5, %c0_6] : memref<11x32xf32, #tpu.memory_space<vmem>>, vector<1x32xf32>
    %5 = arith.truncf %3 : vector<8x16xf32> to vector<8x16xbf16>
    %c0_7 = arith.constant 0 : index
    %c0_8 = arith.constant 0 : index
    %6 = vector.load %arg3[%c0_7, %c0_8] : memref<16x32xbf16, #tpu.memory_space<vmem>>, vector<16x32xbf16>
    %cst = arith.constant dense<0.000000e+00> : vector<8x32xf32>
    %7 = tpu.matmul %5, %6, %cst {dimension_numbers = #tpu.dot_dimension_numbers<[1], [0], [0], [1], [0, 0, 1, 1], [], []>} : vector<8x16xbf16>, vector<16x32xbf16>, vector<8x32xf32> -> vector<8x32xf32>
    %8 = vector.broadcast %4 : vector<1x32xf32> to vector<8x32xf32>
    %9 = arith.addf %7, %8 : vector<8x32xf32>
    %c0_9 = arith.constant 0 : index
    %c0_10 = arith.constant 0 : index
    %10 = vector.load %arg11[%c0_9, %c0_10] : memref<1x96xf32, #tpu.memory_space<vmem>>, vector<1x96xf32>
    %11 = arith.truncf %9 : vector<8x32xf32> to vector<8x32xbf16>
    %c0_11 = arith.constant 0 : index
    %c0_12 = arith.constant 0 : index
    %12 = vector.load %arg4[%c0_11, %c0_12] : memref<32x96xbf16, #tpu.memory_space<vmem>>, vector<32x96xbf16>
    %cst_13 = arith.constant dense<0.000000e+00> : vector<8x96xf32>
    %13 = tpu.matmul %11, %12, %cst_13 {dimension_numbers = #tpu.dot_dimension_numbers<[1], [0], [0], [1], [0, 0, 1, 1], [], []>} : vector<8x32xbf16>, vector<32x96xbf16>, vector<8x96xf32> -> vector<8x96xf32>
    %14 = vector.broadcast %10 : vector<1x96xf32> to vector<8x96xf32>
    %15 = arith.addf %13, %14 : vector<8x96xf32>
    %16 = vector.extract_strided_slice %15 {offsets = [0, 0], sizes = [8, 8], strides = [1, 1]} : vector<8x96xf32> to vector<8x8xf32>
    %17 = vector.extract_strided_slice %15 {offsets = [0, 32], sizes = [8, 8], strides = [1, 1]} : vector<8x96xf32> to vector<8x8xf32>
    %18 = vector.extract_strided_slice %15 {offsets = [0, 64], sizes = [8, 8], strides = [1, 1]} : vector<8x96xf32> to vector<8x8xf32>
    %19 = arith.truncf %16 : vector<8x8xf32> to vector<8x8xbf16>
    %20 = arith.truncf %17 : vector<8x8xf32> to vector<8x8xbf16>
    "tpu.trace_start"() <{level = 10 : i32, message = "qe,ke->qk"}> : () -> ()
    %cst_14 = arith.constant dense<0.000000e+00> : vector<8x8xf32>
    %21 = tpu.matmul %19, %20, %cst_14 {dimension_numbers = #tpu.dot_dimension_numbers<[1], [1], [0], [0], [0, 0, 1, 0], [], []>} : vector<8x8xbf16>, vector<8x8xbf16>, vector<8x8xf32> -> vector<8x8xf32>
    "tpu.trace_stop"() : () -> ()
    %cst_15 = arith.constant dense<0xFF800000> : vector<8xf32>
    %22 = vector.multi_reduction <maximumf>, %21, %cst_15 [1] : vector<8x8xf32> to vector<8xf32>
    %23 = vector.shape_cast %22 : vector<8xf32> to vector<8x1xf32>
    %24 = vector.broadcast %23 : vector<8x1xf32> to vector<8x8xf32>
    %25 = arith.subf %21, %24 : vector<8x8xf32>
    %26 = math.exp %25 : vector<8x8xf32>
    %cst_16 = arith.constant dense<0.000000e+00> : vector<8xf32>
    %27 = vector.multi_reduction <add>, %26, %cst_16 [1] : vector<8x8xf32> to vector<8xf32>
    %28 = vector.shape_cast %27 : vector<8xf32> to vector<8x1xf32>
    %29 = tpu.reciprocal %28 {approx = true} : vector<8x1xf32> -> vector<8x1xf32>
    %30 = vector.broadcast %29 : vector<8x1xf32> to vector<8x8xf32>
    %31 = arith.mulf %26, %30 : vector<8x8xf32>
    %32 = arith.truncf %31 : vector<8x8xf32> to vector<8x8xbf16>
    %33 = arith.truncf %18 : vector<8x8xf32> to vector<8x8xbf16>
    "tpu.trace_start"() <{level = 10 : i32, message = "qk,ke->qe"}> : () -> ()
    %cst_17 = arith.constant dense<0.000000e+00> : vector<8x8xf32>
    %34 = tpu.matmul %32, %33, %cst_17 {dimension_numbers = #tpu.dot_dimension_numbers<[1], [0], [0], [1], [0, 0, 1, 1], [], []>} : vector<8x8xbf16>, vector<8x8xbf16>, vector<8x8xf32> -> vector<8x8xf32>
    "tpu.trace_stop"() : () -> ()
    %c0_18 = arith.constant 0 : index
    %c0_19 = arith.constant 0 : index
    %35 = vector.load %arg16[%c0_18, %c0_19] : memref<32x8xf32, #tpu.memory_space<vmem>>, vector<8x8xf32>
    tpu.vector_store %arg16[%c0_18, %c0_19], %34 {strides = array<i32>} : memref<32x8xf32, #tpu.memory_space<vmem>>, vector<8x8xf32>,
    %36 = vector.extract_strided_slice %15 {offsets = [0, 8], sizes = [8, 8], strides = [1, 1]} : vector<8x96xf32> to vector<8x8xf32>
    %37 = vector.extract_strided_slice %15 {offsets = [0, 40], sizes = [8, 8], strides = [1, 1]} : vector<8x96xf32> to vector<8x8xf32>
    %38 = vector.extract_strided_slice %15 {offsets = [0, 72], sizes = [8, 8], strides = [1, 1]} : vector<8x96xf32> to vector<8x8xf32>
    %39 = arith.truncf %36 : vector<8x8xf32> to vector<8x8xbf16>
    %40 = arith.truncf %37 : vector<8x8xf32> to vector<8x8xbf16>
    "tpu.trace_start"() <{level = 10 : i32, message = "qe,ke->qk"}> : () -> ()
    %cst_20 = arith.constant dense<0.000000e+00> : vector<8x8xf32>
    %41 = tpu.matmul %39, %40, %cst_20 {dimension_numbers = #tpu.dot_dimension_numbers<[1], [1], [0], [0], [0, 0, 1, 0], [], []>} : vector<8x8xbf16>, vector<8x8xbf16>, vector<8x8xf32> -> vector<8x8xf32>
    "tpu.trace_stop"() : () -> ()
    %cst_21 = arith.constant dense<0xFF800000> : vector<8xf32>
    %42 = vector.multi_reduction <maximumf>, %41, %cst_21 [1] : vector<8x8xf32> to vector<8xf32>
    %43 = vector.shape_cast %42 : vector<8xf32> to vector<8x1xf32>
    %44 = vector.broadcast %43 : vector<8x1xf32> to vector<8x8xf32>
    %45 = arith.subf %41, %44 : vector<8x8xf32>
    %46 = math.exp %45 : vector<8x8xf32>
    %cst_22 = arith.constant dense<0.000000e+00> : vector<8xf32>
    %47 = vector.multi_reduction <add>, %46, %cst_22 [1] : vector<8x8xf32> to vector<8xf32>
    %48 = vector.shape_cast %47 : vector<8xf32> to vector<8x1xf32>
    %49 = tpu.reciprocal %48 {approx = true} : vector<8x1xf32> -> vector<8x1xf32>
    %50 = vector.broadcast %49 : vector<8x1xf32> to vector<8x8xf32>
    %51 = arith.mulf %46, %50 : vector<8x8xf32>
    %52 = arith.truncf %51 : vector<8x8xf32> to vector<8x8xbf16>
    %53 = arith.truncf %38 : vector<8x8xf32> to vector<8x8xbf16>
    "tpu.trace_start"() <{level = 10 : i32, message = "qk,ke->qe"}> : () -> ()
    %cst_23 = arith.constant dense<0.000000e+00> : vector<8x8xf32>
    %54 = tpu.matmul %52, %53, %cst_23 {dimension_numbers = #tpu.dot_dimension_numbers<[1], [0], [0], [1], [0, 0, 1, 1], [], []>} : vector<8x8xbf16>, vector<8x8xbf16>, vector<8x8xf32> -> vector<8x8xf32>
    "tpu.trace_stop"() : () -> ()
    %c8 = arith.constant 8 : index
    %c0_24 = arith.constant 0 : index
    %55 = vector.load %arg16[%c8, %c0_24] : memref<32x8xf32, #tpu.memory_space<vmem>>, vector<8x8xf32>
    tpu.vector_store %arg16[%c8, %c0_24], %54 {strides = array<i32>} : memref<32x8xf32, #tpu.memory_space<vmem>>, vector<8x8xf32>,
    %56 = vector.extract_strided_slice %15 {offsets = [0, 16], sizes = [8, 8], strides = [1, 1]} : vector<8x96xf32> to vector<8x8xf32>
    %57 = vector.extract_strided_slice %15 {offsets = [0, 48], sizes = [8, 8], strides = [1, 1]} : vector<8x96xf32> to vector<8x8xf32>
    %58 = vector.extract_strided_slice %15 {offsets = [0, 80], sizes = [8, 8], strides = [1, 1]} : vector<8x96xf32> to vector<8x8xf32>
    %59 = arith.truncf %56 : vector<8x8xf32> to vector<8x8xbf16>
    %60 = arith.truncf %57 : vector<8x8xf32> to vector<8x8xbf16>
    "tpu.trace_start"() <{level = 10 : i32, message = "qe,ke->qk"}> : () -> ()
    %cst_25 = arith.constant dense<0.000000e+00> : vector<8x8xf32>
    %61 = tpu.matmul %59, %60, %cst_25 {dimension_numbers = #tpu.dot_dimension_numbers<[1], [1], [0], [0], [0, 0, 1, 0], [], []>} : vector<8x8xbf16>, vector<8x8xbf16>, vector<8x8xf32> -> vector<8x8xf32>
    "tpu.trace_stop"() : () -> ()
    %cst_26 = arith.constant dense<0xFF800000> : vector<8xf32>
    %62 = vector.multi_reduction <maximumf>, %61, %cst_26 [1] : vector<8x8xf32> to vector<8xf32>
    %63 = vector.shape_cast %62 : vector<8xf32> to vector<8x1xf32>
    %64 = vector.broadcast %63 : vector<8x1xf32> to vector<8x8xf32>
    %65 = arith.subf %61, %64 : vector<8x8xf32>
    %66 = math.exp %65 : vector<8x8xf32>
    %cst_27 = arith.constant dense<0.000000e+00> : vector<8xf32>
    %67 = vector.multi_reduction <add>, %66, %cst_27 [1] : vector<8x8xf32> to vector<8xf32>
    %68 = vector.shape_cast %67 : vector<8xf32> to vector<8x1xf32>
    %69 = tpu.reciprocal %68 {approx = true} : vector<8x1xf32> -> vector<8x1xf32>
    %70 = vector.broadcast %69 : vector<8x1xf32> to vector<8x8xf32>
    %71 = arith.mulf %66, %70 : vector<8x8xf32>
    %72 = arith.truncf %71 : vector<8x8xf32> to vector<8x8xbf16>
    %73 = arith.truncf %58 : vector<8x8xf32> to vector<8x8xbf16>
    "tpu.trace_start"() <{level = 10 : i32, message = "qk,ke->qe"}> : () -> ()
    %cst_28 = arith.constant dense<0.000000e+00> : vector<8x8xf32>
    %74 = tpu.matmul %72, %73, %cst_28 {dimension_numbers = #tpu.dot_dimension_numbers<[1], [0], [0], [1], [0, 0, 1, 1], [], []>} : vector<8x8xbf16>, vector<8x8xbf16>, vector<8x8xf32> -> vector<8x8xf32>
    "tpu.trace_stop"() : () -> ()
    %c16 = arith.constant 16 : index
    %c0_29 = arith.constant 0 : index
    %75 = vector.load %arg16[%c16, %c0_29] : memref<32x8xf32, #tpu.memory_space<vmem>>, vector<8x8xf32>
    tpu.vector_store %arg16[%c16, %c0_29], %74 {strides = array<i32>} : memref<32x8xf32, #tpu.memory_space<vmem>>, vector<8x8xf32>,
    %76 = vector.extract_strided_slice %15 {offsets = [0, 24], sizes = [8, 8], strides = [1, 1]} : vector<8x96xf32> to vector<8x8xf32>
    %77 = vector.extract_strided_slice %15 {offsets = [0, 56], sizes = [8, 8], strides = [1, 1]} : vector<8x96xf32> to vector<8x8xf32>
    %78 = vector.extract_strided_slice %15 {offsets = [0, 88], sizes = [8, 8], strides = [1, 1]} : vector<8x96xf32> to vector<8x8xf32>
    %79 = arith.truncf %76 : vector<8x8xf32> to vector<8x8xbf16>
    %80 = arith.truncf %77 : vector<8x8xf32> to vector<8x8xbf16>
    "tpu.trace_start"() <{level = 10 : i32, message = "qe,ke->qk"}> : () -> ()
    %cst_30 = arith.constant dense<0.000000e+00> : vector<8x8xf32>
    %81 = tpu.matmul %79, %80, %cst_30 {dimension_numbers = #tpu.dot_dimension_numbers<[1], [1], [0], [0], [0, 0, 1, 0], [], []>} : vector<8x8xbf16>, vector<8x8xbf16>, vector<8x8xf32> -> vector<8x8xf32>
    "tpu.trace_stop"() : () -> ()
    %cst_31 = arith.constant dense<0xFF800000> : vector<8xf32>
    %82 = vector.multi_reduction <maximumf>, %81, %cst_31 [1] : vector<8x8xf32> to vector<8xf32>
    %83 = vector.shape_cast %82 : vector<8xf32> to vector<8x1xf32>
    %84 = vector.broadcast %83 : vector<8x1xf32> to vector<8x8xf32>
    %85 = arith.subf %81, %84 : vector<8x8xf32>
    %86 = math.exp %85 : vector<8x8xf32>
    %cst_32 = arith.constant dense<0.000000e+00> : vector<8xf32>
    %87 = vector.multi_reduction <add>, %86, %cst_32 [1] : vector<8x8xf32> to vector<8xf32>
    %88 = vector.shape_cast %87 : vector<8xf32> to vector<8x1xf32>
    %89 = tpu.reciprocal %88 {approx = true} : vector<8x1xf32> -> vector<8x1xf32>
    %90 = vector.broadcast %89 : vector<8x1xf32> to vector<8x8xf32>
    %91 = arith.mulf %86, %90 : vector<8x8xf32>
    %92 = arith.truncf %91 : vector<8x8xf32> to vector<8x8xbf16>
    %93 = arith.truncf %78 : vector<8x8xf32> to vector<8x8xbf16>
    "tpu.trace_start"() <{level = 10 : i32, message = "qk,ke->qe"}> : () -> ()
    %cst_33 = arith.constant dense<0.000000e+00> : vector<8x8xf32>
    %94 = tpu.matmul %92, %93, %cst_33 {dimension_numbers = #tpu.dot_dimension_numbers<[1], [0], [0], [1], [0, 0, 1, 1], [], []>} : vector<8x8xbf16>, vector<8x8xbf16>, vector<8x8xf32> -> vector<8x8xf32>
    "tpu.trace_stop"() : () -> ()
    %c24 = arith.constant 24 : index
    %c0_34 = arith.constant 0 : index
    %95 = vector.load %arg16[%c24, %c0_34] : memref<32x8xf32, #tpu.memory_space<vmem>>, vector<8x8xf32>
    tpu.vector_store %arg16[%c24, %c0_34], %94 {strides = array<i32>} : memref<32x8xf32, #tpu.memory_space<vmem>>, vector<8x8xf32>,
    %c1 = arith.constant 1 : index
    %c0_35 = arith.constant 0 : index
    %96 = vector.load %arg14[%c1, %c0_35] : memref<11x32xf32, #tpu.memory_space<vmem>>, vector<1x32xf32>
    %c0_36 = arith.constant 0 : index
    %c0_37 = arith.constant 0 : index
    %97 = tpu.strided_load %arg16[%c0_36, %c0_37] {strides = array<i32: 4, 1>} : memref<32x8xf32, #tpu.memory_space<vmem>>, vector<8x8xf32>
    %c1_38 = arith.constant 1 : index
    %c0_39 = arith.constant 0 : index
    %98 = tpu.strided_load %arg16[%c1_38, %c0_39] {strides = array<i32: 4, 1>} : memref<32x8xf32, #tpu.memory_space<vmem>>, vector<8x8xf32>
    %c2 = arith.constant 2 : index
    %c0_40 = arith.constant 0 : index
    %99 = tpu.strided_load %arg16[%c2, %c0_40] {strides = array<i32: 4, 1>} : memref<32x8xf32, #tpu.memory_space<vmem>>, vector<8x8xf32>
    %c3 = arith.constant 3 : index
    %c0_41 = arith.constant 0 : index
    %100 = tpu.strided_load %arg16[%c3, %c0_41] {strides = array<i32: 4, 1>} : memref<32x8xf32, #tpu.memory_space<vmem>>, vector<8x8xf32>
    %101 = tpu.concatenate %97, %98, %99, %100 in 1 : vector<8x8xf32>, vector<8x8xf32>, vector<8x8xf32>, vector<8x8xf32> -> vector<8x32xf32>
    %102 = arith.truncf %101 : vector<8x32xf32> to vector<8x32xbf16>
    %c0_42 = arith.constant 0 : index
    %c0_43 = arith.constant 0 : index
    %103 = vector.load %arg5[%c0_42, %c0_43] : memref<32x32xbf16, #tpu.memory_space<vmem>>, vector<32x32xbf16>
    %cst_44 = arith.constant dense<0.000000e+00> : vector<8x32xf32>
    %104 = tpu.matmul %102, %103, %cst_44 {dimension_numbers = #tpu.dot_dimension_numbers<[1], [0], [0], [1], [0, 0, 1, 1], [], []>} : vector<8x32xbf16>, vector<32x32xbf16>, vector<8x32xf32> -> vector<8x32xf32>
    %105 = vector.broadcast %96 : vector<1x32xf32> to vector<8x32xf32>
    %106 = arith.addf %104, %105 : vector<8x32xf32>
    %107 = arith.addf %106, %9 : vector<8x32xf32>
    %cst_45 = arith.constant dense<0.000000e+00> : vector<8xf32>
    %108 = vector.multi_reduction <add>, %107, %cst_45 [1] : vector<8x32xf32> to vector<8xf32>
    %109 = vector.shape_cast %108 : vector<8xf32> to vector<8x1xf32>
    %cst_46 = arith.constant 3.200000e+01 : f32
    %110 = vector.broadcast %cst_46 : f32 to vector<8x1xf32>
    %111 = arith.divf %109, %110 : vector<8x1xf32>
    %112 = vector.broadcast %111 : vector<8x1xf32> to vector<8x32xf32>
    %113 = arith.subf %107, %112 : vector<8x32xf32>
    %114 = arith.mulf %113, %113 : vector<8x32xf32>
    %cst_47 = arith.constant dense<0.000000e+00> : vector<8xf32>
    %115 = vector.multi_reduction <add>, %114, %cst_47 [1] : vector<8x32xf32> to vector<8xf32>
    %116 = vector.shape_cast %115 : vector<8xf32> to vector<8x1xf32>
    %cst_48 = arith.constant 3.200000e+01 : f32
    %117 = vector.broadcast %cst_48 : f32 to vector<8x1xf32>
    %118 = arith.divf %116, %117 : vector<8x1xf32>
    %c2_49 = arith.constant 2 : index
    %c0_50 = arith.constant 0 : index
    %119 = vector.load %arg14[%c2_49, %c0_50] : memref<11x32xf32, #tpu.memory_space<vmem>>, vector<1x32xf32>
    %cst_51 = arith.constant 9.99999974E-6 : f32
    %120 = vector.broadcast %cst_51 : f32 to vector<8x1xf32>
    %121 = arith.addf %118, %120 : vector<8x1xf32>
    %122 = math.rsqrt %121 : vector<8x1xf32>
    %123 = vector.broadcast %122 : vector<8x1xf32> to vector<8x32xf32>
    %124 = arith.mulf %113, %123 : vector<8x32xf32>
    %125 = vector.broadcast %119 : vector<1x32xf32> to vector<8x32xf32>
    %126 = arith.mulf %125, %124 : vector<8x32xf32>
    %c3_52 = arith.constant 3 : index
    %c0_53 = arith.constant 0 : index
    %127 = vector.load %arg14[%c3_52, %c0_53] : memref<11x32xf32, #tpu.memory_space<vmem>>, vector<1x32xf32>
    %128 = vector.broadcast %127 : vector<1x32xf32> to vector<8x32xf32>
    %129 = arith.addf %126, %128 : vector<8x32xf32>
    %c0_54 = arith.constant 0 : index
    %c0_55 = arith.constant 0 : index
    %130 = vector.load %arg12[%c0_54, %c0_55] : memref<1x64xf32, #tpu.memory_space<vmem>>, vector<1x64xf32>
    %131 = arith.truncf %1 : vector<8x32xf32> to vector<8x32xbf16>
    %c0_56 = arith.constant 0 : index
    %c0_57 = arith.constant 0 : index
    %132 = vector.load %arg6[%c0_56, %c0_57] : memref<32x64xbf16, #tpu.memory_space<vmem>>, vector<32x64xbf16>
    %cst_58 = arith.constant dense<0.000000e+00> : vector<8x64xf32>
    %133 = tpu.matmul %131, %132, %cst_58 {dimension_numbers = #tpu.dot_dimension_numbers<[1], [0], [0], [1], [0, 0, 1, 1], [], []>} : vector<8x32xbf16>, vector<32x64xbf16>, vector<8x64xf32> -> vector<8x64xf32>
    %134 = vector.broadcast %130 : vector<1x64xf32> to vector<8x64xf32>
    %135 = arith.addf %133, %134 : vector<8x64xf32>
    %c4 = arith.constant 4 : index
    %c0_59 = arith.constant 0 : index
    %136 = vector.load %arg14[%c4, %c0_59] : memref<11x32xf32, #tpu.memory_space<vmem>>, vector<1x32xf32>
    %137 = arith.truncf %129 : vector<8x32xf32> to vector<8x32xbf16>
    %c0_60 = arith.constant 0 : index
    %c0_61 = arith.constant 0 : index
    %138 = vector.load %arg7[%c0_60, %c0_61] : memref<32x32xbf16, #tpu.memory_space<vmem>>, vector<32x32xbf16>
    %cst_62 = arith.constant dense<0.000000e+00> : vector<8x32xf32>
    %139 = tpu.matmul %137, %138, %cst_62 {dimension_numbers = #tpu.dot_dimension_numbers<[1], [0], [0], [1], [0, 0, 1, 1], [], []>} : vector<8x32xbf16>, vector<32x32xbf16>, vector<8x32xf32> -> vector<8x32xf32>
    %140 = vector.broadcast %136 : vector<1x32xf32> to vector<8x32xf32>
    %141 = arith.addf %139, %140 : vector<8x32xf32>
    %142 = vector.extract_strided_slice %141 {offsets = [0, 0], sizes = [8, 8], strides = [1, 1]} : vector<8x32xf32> to vector<8x8xf32>
    %143 = vector.extract_strided_slice %135 {offsets = [0, 0], sizes = [8, 8], strides = [1, 1]} : vector<8x64xf32> to vector<8x8xf32>
    %144 = vector.extract_strided_slice %135 {offsets = [0, 32], sizes = [8, 8], strides = [1, 1]} : vector<8x64xf32> to vector<8x8xf32>
    %145 = arith.truncf %142 : vector<8x8xf32> to vector<8x8xbf16>
    %146 = arith.truncf %143 : vector<8x8xf32> to vector<8x8xbf16>
    "tpu.trace_start"() <{level = 10 : i32, message = "qe,ke->qk"}> : () -> ()
    %cst_63 = arith.constant dense<0.000000e+00> : vector<8x8xf32>
    %147 = tpu.matmul %145, %146, %cst_63 {dimension_numbers = #tpu.dot_dimension_numbers<[1], [1], [0], [0], [0, 0, 1, 0], [], []>} : vector<8x8xbf16>, vector<8x8xbf16>, vector<8x8xf32> -> vector<8x8xf32>
    "tpu.trace_stop"() : () -> ()
    %cst_64 = arith.constant dense<0xFF800000> : vector<8xf32>
    %148 = vector.multi_reduction <maximumf>, %147, %cst_64 [1] : vector<8x8xf32> to vector<8xf32>
    %149 = vector.shape_cast %148 : vector<8xf32> to vector<8x1xf32>
    %150 = vector.broadcast %149 : vector<8x1xf32> to vector<8x8xf32>
    %151 = arith.subf %147, %150 : vector<8x8xf32>
    %152 = math.exp %151 : vector<8x8xf32>
    %cst_65 = arith.constant dense<0.000000e+00> : vector<8xf32>
    %153 = vector.multi_reduction <add>, %152, %cst_65 [1] : vector<8x8xf32> to vector<8xf32>
    %154 = vector.shape_cast %153 : vector<8xf32> to vector<8x1xf32>
    %155 = tpu.reciprocal %154 {approx = true} : vector<8x1xf32> -> vector<8x1xf32>
    %156 = vector.broadcast %155 : vector<8x1xf32> to vector<8x8xf32>
    %157 = arith.mulf %152, %156 : vector<8x8xf32>
    %158 = arith.truncf %157 : vector<8x8xf32> to vector<8x8xbf16>
    %159 = arith.truncf %144 : vector<8x8xf32> to vector<8x8xbf16>
    "tpu.trace_start"() <{level = 10 : i32, message = "qk,ke->qe"}> : () -> ()
    %cst_66 = arith.constant dense<0.000000e+00> : vector<8x8xf32>
    %160 = tpu.matmul %158, %159, %cst_66 {dimension_numbers = #tpu.dot_dimension_numbers<[1], [0], [0], [1], [0, 0, 1, 1], [], []>} : vector<8x8xbf16>, vector<8x8xbf16>, vector<8x8xf32> -> vector<8x8xf32>
    "tpu.trace_stop"() : () -> ()
    %c0_67 = arith.constant 0 : index
    %c0_68 = arith.constant 0 : index
    %161 = vector.load %arg16[%c0_67, %c0_68] : memref<32x8xf32, #tpu.memory_space<vmem>>, vector<8x8xf32>
    tpu.vector_store %arg16[%c0_67, %c0_68], %160 {strides = array<i32>} : memref<32x8xf32, #tpu.memory_space<vmem>>, vector<8x8xf32>,
    %162 = vector.extract_strided_slice %141 {offsets = [0, 8], sizes = [8, 8], strides = [1, 1]} : vector<8x32xf32> to vector<8x8xf32>
    %163 = vector.extract_strided_slice %135 {offsets = [0, 8], sizes = [8, 8], strides = [1, 1]} : vector<8x64xf32> to vector<8x8xf32>
    %164 = vector.extract_strided_slice %135 {offsets = [0, 40], sizes = [8, 8], strides = [1, 1]} : vector<8x64xf32> to vector<8x8xf32>
    %165 = arith.truncf %162 : vector<8x8xf32> to vector<8x8xbf16>
    %166 = arith.truncf %163 : vector<8x8xf32> to vector<8x8xbf16>
    "tpu.trace_start"() <{level = 10 : i32, message = "qe,ke->qk"}> : () -> ()
    %cst_69 = arith.constant dense<0.000000e+00> : vector<8x8xf32>
    %167 = tpu.matmul %165, %166, %cst_69 {dimension_numbers = #tpu.dot_dimension_numbers<[1], [1], [0], [0], [0, 0, 1, 0], [], []>} : vector<8x8xbf16>, vector<8x8xbf16>, vector<8x8xf32> -> vector<8x8xf32>
    "tpu.trace_stop"() : () -> ()
    %cst_70 = arith.constant dense<0xFF800000> : vector<8xf32>
    %168 = vector.multi_reduction <maximumf>, %167, %cst_70 [1] : vector<8x8xf32> to vector<8xf32>
    %169 = vector.shape_cast %168 : vector<8xf32> to vector<8x1xf32>
    %170 = vector.broadcast %169 : vector<8x1xf32> to vector<8x8xf32>
    %171 = arith.subf %167, %170 : vector<8x8xf32>
    %172 = math.exp %171 : vector<8x8xf32>
    %cst_71 = arith.constant dense<0.000000e+00> : vector<8xf32>
    %173 = vector.multi_reduction <add>, %172, %cst_71 [1] : vector<8x8xf32> to vector<8xf32>
    %174 = vector.shape_cast %173 : vector<8xf32> to vector<8x1xf32>
    %175 = tpu.reciprocal %174 {approx = true} : vector<8x1xf32> -> vector<8x1xf32>
    %176 = vector.broadcast %175 : vector<8x1xf32> to vector<8x8xf32>
    %177 = arith.mulf %172, %176 : vector<8x8xf32>
    %178 = arith.truncf %177 : vector<8x8xf32> to vector<8x8xbf16>
    %179 = arith.truncf %164 : vector<8x8xf32> to vector<8x8xbf16>
    "tpu.trace_start"() <{level = 10 : i32, message = "qk,ke->qe"}> : () -> ()
    %cst_72 = arith.constant dense<0.000000e+00> : vector<8x8xf32>
    %180 = tpu.matmul %178, %179, %cst_72 {dimension_numbers = #tpu.dot_dimension_numbers<[1], [0], [0], [1], [0, 0, 1, 1], [], []>} : vector<8x8xbf16>, vector<8x8xbf16>, vector<8x8xf32> -> vector<8x8xf32>
    "tpu.trace_stop"() : () -> ()
    %c8_73 = arith.constant 8 : index
    %c0_74 = arith.constant 0 : index
    %181 = vector.load %arg16[%c8_73, %c0_74] : memref<32x8xf32, #tpu.memory_space<vmem>>, vector<8x8xf32>
    tpu.vector_store %arg16[%c8_73, %c0_74], %180 {strides = array<i32>} : memref<32x8xf32, #tpu.memory_space<vmem>>, vector<8x8xf32>,
    %182 = vector.extract_strided_slice %141 {offsets = [0, 16], sizes = [8, 8], strides = [1, 1]} : vector<8x32xf32> to vector<8x8xf32>
    %183 = vector.extract_strided_slice %135 {offsets = [0, 16], sizes = [8, 8], strides = [1, 1]} : vector<8x64xf32> to vector<8x8xf32>
    %184 = vector.extract_strided_slice %135 {offsets = [0, 48], sizes = [8, 8], strides = [1, 1]} : vector<8x64xf32> to vector<8x8xf32>
    %185 = arith.truncf %182 : vector<8x8xf32> to vector<8x8xbf16>
    %186 = arith.truncf %183 : vector<8x8xf32> to vector<8x8xbf16>
    "tpu.trace_start"() <{level = 10 : i32, message = "qe,ke->qk"}> : () -> ()
    %cst_75 = arith.constant dense<0.000000e+00> : vector<8x8xf32>
    %187 = tpu.matmul %185, %186, %cst_75 {dimension_numbers = #tpu.dot_dimension_numbers<[1], [1], [0], [0], [0, 0, 1, 0], [], []>} : vector<8x8xbf16>, vector<8x8xbf16>, vector<8x8xf32> -> vector<8x8xf32>
    "tpu.trace_stop"() : () -> ()
    %cst_76 = arith.constant dense<0xFF800000> : vector<8xf32>
    %188 = vector.multi_reduction <maximumf>, %187, %cst_76 [1] : vector<8x8xf32> to vector<8xf32>
    %189 = vector.shape_cast %188 : vector<8xf32> to vector<8x1xf32>
    %190 = vector.broadcast %189 : vector<8x1xf32> to vector<8x8xf32>
    %191 = arith.subf %187, %190 : vector<8x8xf32>
    %192 = math.exp %191 : vector<8x8xf32>
    %cst_77 = arith.constant dense<0.000000e+00> : vector<8xf32>
    %193 = vector.multi_reduction <add>, %192, %cst_77 [1] : vector<8x8xf32> to vector<8xf32>
    %194 = vector.shape_cast %193 : vector<8xf32> to vector<8x1xf32>
    %195 = tpu.reciprocal %194 {approx = true} : vector<8x1xf32> -> vector<8x1xf32>
    %196 = vector.broadcast %195 : vector<8x1xf32> to vector<8x8xf32>
    %197 = arith.mulf %192, %196 : vector<8x8xf32>
    %198 = arith.truncf %197 : vector<8x8xf32> to vector<8x8xbf16>
    %199 = arith.truncf %184 : vector<8x8xf32> to vector<8x8xbf16>
    "tpu.trace_start"() <{level = 10 : i32, message = "qk,ke->qe"}> : () -> ()
    %cst_78 = arith.constant dense<0.000000e+00> : vector<8x8xf32>
    %200 = tpu.matmul %198, %199, %cst_78 {dimension_numbers = #tpu.dot_dimension_numbers<[1], [0], [0], [1], [0, 0, 1, 1], [], []>} : vector<8x8xbf16>, vector<8x8xbf16>, vector<8x8xf32> -> vector<8x8xf32>
    "tpu.trace_stop"() : () -> ()
    %c16_79 = arith.constant 16 : index
    %c0_80 = arith.constant 0 : index
    %201 = vector.load %arg16[%c16_79, %c0_80] : memref<32x8xf32, #tpu.memory_space<vmem>>, vector<8x8xf32>
    tpu.vector_store %arg16[%c16_79, %c0_80], %200 {strides = array<i32>} : memref<32x8xf32, #tpu.memory_space<vmem>>, vector<8x8xf32>,
    %202 = vector.extract_strided_slice %141 {offsets = [0, 24], sizes = [8, 8], strides = [1, 1]} : vector<8x32xf32> to vector<8x8xf32>
    %203 = vector.extract_strided_slice %135 {offsets = [0, 24], sizes = [8, 8], strides = [1, 1]} : vector<8x64xf32> to vector<8x8xf32>
    %204 = vector.extract_strided_slice %135 {offsets = [0, 56], sizes = [8, 8], strides = [1, 1]} : vector<8x64xf32> to vector<8x8xf32>
    %205 = arith.truncf %202 : vector<8x8xf32> to vector<8x8xbf16>
    %206 = arith.truncf %203 : vector<8x8xf32> to vector<8x8xbf16>
    "tpu.trace_start"() <{level = 10 : i32, message = "qe,ke->qk"}> : () -> ()
    %cst_81 = arith.constant dense<0.000000e+00> : vector<8x8xf32>
    %207 = tpu.matmul %205, %206, %cst_81 {dimension_numbers = #tpu.dot_dimension_numbers<[1], [1], [0], [0], [0, 0, 1, 0], [], []>} : vector<8x8xbf16>, vector<8x8xbf16>, vector<8x8xf32> -> vector<8x8xf32>
    "tpu.trace_stop"() : () -> ()
    %cst_82 = arith.constant dense<0xFF800000> : vector<8xf32>
    %208 = vector.multi_reduction <maximumf>, %207, %cst_82 [1] : vector<8x8xf32> to vector<8xf32>
    %209 = vector.shape_cast %208 : vector<8xf32> to vector<8x1xf32>
    %210 = vector.broadcast %209 : vector<8x1xf32> to vector<8x8xf32>
    %211 = arith.subf %207, %210 : vector<8x8xf32>
    %212 = math.exp %211 : vector<8x8xf32>
    %cst_83 = arith.constant dense<0.000000e+00> : vector<8xf32>
    %213 = vector.multi_reduction <add>, %212, %cst_83 [1] : vector<8x8xf32> to vector<8xf32>
    %214 = vector.shape_cast %213 : vector<8xf32> to vector<8x1xf32>
    %215 = tpu.reciprocal %214 {approx = true} : vector<8x1xf32> -> vector<8x1xf32>
    %216 = vector.broadcast %215 : vector<8x1xf32> to vector<8x8xf32>
    %217 = arith.mulf %212, %216 : vector<8x8xf32>
    %218 = arith.truncf %217 : vector<8x8xf32> to vector<8x8xbf16>
    %219 = arith.truncf %204 : vector<8x8xf32> to vector<8x8xbf16>
    "tpu.trace_start"() <{level = 10 : i32, message = "qk,ke->qe"}> : () -> ()
    %cst_84 = arith.constant dense<0.000000e+00> : vector<8x8xf32>
    %220 = tpu.matmul %218, %219, %cst_84 {dimension_numbers = #tpu.dot_dimension_numbers<[1], [0], [0], [1], [0, 0, 1, 1], [], []>} : vector<8x8xbf16>, vector<8x8xbf16>, vector<8x8xf32> -> vector<8x8xf32>
    "tpu.trace_stop"() : () -> ()
    %c24_85 = arith.constant 24 : index
    %c0_86 = arith.constant 0 : index
    %221 = vector.load %arg16[%c24_85, %c0_86] : memref<32x8xf32, #tpu.memory_space<vmem>>, vector<8x8xf32>
    tpu.vector_store %arg16[%c24_85, %c0_86], %220 {strides = array<i32>} : memref<32x8xf32, #tpu.memory_space<vmem>>, vector<8x8xf32>,
    %c5 = arith.constant 5 : index
    %c0_87 = arith.constant 0 : index
    %222 = vector.load %arg14[%c5, %c0_87] : memref<11x32xf32, #tpu.memory_space<vmem>>, vector<1x32xf32>
    %c0_88 = arith.constant 0 : index
    %c0_89 = arith.constant 0 : index
    %223 = tpu.strided_load %arg16[%c0_88, %c0_89] {strides = array<i32: 4, 1>} : memref<32x8xf32, #tpu.memory_space<vmem>>, vector<8x8xf32>
    %c1_90 = arith.constant 1 : index
    %c0_91 = arith.constant 0 : index
    %224 = tpu.strided_load %arg16[%c1_90, %c0_91] {strides = array<i32: 4, 1>} : memref<32x8xf32, #tpu.memory_space<vmem>>, vector<8x8xf32>
    %c2_92 = arith.constant 2 : index
    %c0_93 = arith.constant 0 : index
    %225 = tpu.strided_load %arg16[%c2_92, %c0_93] {strides = array<i32: 4, 1>} : memref<32x8xf32, #tpu.memory_space<vmem>>, vector<8x8xf32>
    %c3_94 = arith.constant 3 : index
    %c0_95 = arith.constant 0 : index
    %226 = tpu.strided_load %arg16[%c3_94, %c0_95] {strides = array<i32: 4, 1>} : memref<32x8xf32, #tpu.memory_space<vmem>>, vector<8x8xf32>
    %227 = tpu.concatenate %223, %224, %225, %226 in 1 : vector<8x8xf32>, vector<8x8xf32>, vector<8x8xf32>, vector<8x8xf32> -> vector<8x32xf32>
    %228 = arith.truncf %227 : vector<8x32xf32> to vector<8x32xbf16>
    %c0_96 = arith.constant 0 : index
    %c0_97 = arith.constant 0 : index
    %229 = vector.load %arg8[%c0_96, %c0_97] : memref<32x32xbf16, #tpu.memory_space<vmem>>, vector<32x32xbf16>
    %cst_98 = arith.constant dense<0.000000e+00> : vector<8x32xf32>
    %230 = tpu.matmul %228, %229, %cst_98 {dimension_numbers = #tpu.dot_dimension_numbers<[1], [0], [0], [1], [0, 0, 1, 1], [], []>} : vector<8x32xbf16>, vector<32x32xbf16>, vector<8x32xf32> -> vector<8x32xf32>
    %231 = vector.broadcast %222 : vector<1x32xf32> to vector<8x32xf32>
    %232 = arith.addf %230, %231 : vector<8x32xf32>
    %233 = arith.addf %232, %129 : vector<8x32xf32>
    %cst_99 = arith.constant dense<0.000000e+00> : vector<8xf32>
    %234 = vector.multi_reduction <add>, %233, %cst_99 [1] : vector<8x32xf32> to vector<8xf32>
    %235 = vector.shape_cast %234 : vector<8xf32> to vector<8x1xf32>
    %cst_100 = arith.constant 3.200000e+01 : f32
    %236 = vector.broadcast %cst_100 : f32 to vector<8x1xf32>
    %237 = arith.divf %235, %236 : vector<8x1xf32>
    %238 = vector.broadcast %237 : vector<8x1xf32> to vector<8x32xf32>
    %239 = arith.subf %233, %238 : vector<8x32xf32>
    %240 = arith.mulf %239, %239 : vector<8x32xf32>
    %cst_101 = arith.constant dense<0.000000e+00> : vector<8xf32>
    %241 = vector.multi_reduction <add>, %240, %cst_101 [1] : vector<8x32xf32> to vector<8xf32>
    %242 = vector.shape_cast %241 : vector<8xf32> to vector<8x1xf32>
    %cst_102 = arith.constant 3.200000e+01 : f32
    %243 = vector.broadcast %cst_102 : f32 to vector<8x1xf32>
    %244 = arith.divf %242, %243 : vector<8x1xf32>
    %c6 = arith.constant 6 : index
    %c0_103 = arith.constant 0 : index
    %245 = vector.load %arg14[%c6, %c0_103] : memref<11x32xf32, #tpu.memory_space<vmem>>, vector<1x32xf32>
    %cst_104 = arith.constant 9.99999974E-6 : f32
    %246 = vector.broadcast %cst_104 : f32 to vector<8x1xf32>
    %247 = arith.addf %244, %246 : vector<8x1xf32>
    %248 = math.rsqrt %247 : vector<8x1xf32>
    %249 = vector.broadcast %248 : vector<8x1xf32> to vector<8x32xf32>
    %250 = arith.mulf %239, %249 : vector<8x32xf32>
    %251 = vector.broadcast %245 : vector<1x32xf32> to vector<8x32xf32>
    %252 = arith.mulf %251, %250 : vector<8x32xf32>
    %c7 = arith.constant 7 : index
    %c0_105 = arith.constant 0 : index
    %253 = vector.load %arg14[%c7, %c0_105] : memref<11x32xf32, #tpu.memory_space<vmem>>, vector<1x32xf32>
    %254 = vector.broadcast %253 : vector<1x32xf32> to vector<8x32xf32>
    %255 = arith.addf %252, %254 : vector<8x32xf32>
    %c0_106 = arith.constant 0 : index
    %c0_107 = arith.constant 0 : index
    %256 = vector.load %arg13[%c0_106, %c0_107] : memref<1x64xf32, #tpu.memory_space<vmem>>, vector<1x64xf32>
    %257 = arith.truncf %255 : vector<8x32xf32> to vector<8x32xbf16>
    %c0_108 = arith.constant 0 : index
    %c0_109 = arith.constant 0 : index
    %258 = vector.load %arg9[%c0_108, %c0_109] : memref<32x64xbf16, #tpu.memory_space<vmem>>, vector<32x64xbf16>
    %cst_110 = arith.constant dense<0.000000e+00> : vector<8x64xf32>
    %259 = tpu.matmul %257, %258, %cst_110 {dimension_numbers = #tpu.dot_dimension_numbers<[1], [0], [0], [1], [0, 0, 1, 1], [], []>} : vector<8x32xbf16>, vector<32x64xbf16>, vector<8x64xf32> -> vector<8x64xf32>
    %260 = vector.broadcast %256 : vector<1x64xf32> to vector<8x64xf32>
    %261 = arith.addf %259, %260 : vector<8x64xf32>
    %cst_111 = arith.constant 0.000000e+00 : f32
    %262 = vector.broadcast %cst_111 : f32 to vector<8x64xf32>
    %263 = arith.maximumf %261, %262 : vector<8x64xf32>
    %c8_112 = arith.constant 8 : index
    %c0_113 = arith.constant 0 : index
    %264 = vector.load %arg14[%c8_112, %c0_113] : memref<11x32xf32, #tpu.memory_space<vmem>>, vector<1x32xf32>
    %265 = arith.truncf %263 : vector<8x64xf32> to vector<8x64xbf16>
    %c0_114 = arith.constant 0 : index
    %c0_115 = arith.constant 0 : index
    %266 = vector.load %arg10[%c0_114, %c0_115] : memref<64x32xbf16, #tpu.memory_space<vmem>>, vector<64x32xbf16>
    %cst_116 = arith.constant dense<0.000000e+00> : vector<8x32xf32>
    %267 = tpu.matmul %265, %266, %cst_116 {dimension_numbers = #tpu.dot_dimension_numbers<[1], [0], [0], [1], [0, 0, 1, 1], [], []>} : vector<8x64xbf16>, vector<64x32xbf16>, vector<8x32xf32> -> vector<8x32xf32>
    %268 = vector.broadcast %264 : vector<1x32xf32> to vector<8x32xf32>
    %269 = arith.addf %267, %268 : vector<8x32xf32>
    %270 = arith.addf %269, %255 : vector<8x32xf32>
    %cst_117 = arith.constant dense<0.000000e+00> : vector<8xf32>
    %271 = vector.multi_reduction <add>, %270, %cst_117 [1] : vector<8x32xf32> to vector<8xf32>
    %272 = vector.shape_cast %271 : vector<8xf32> to vector<8x1xf32>
    %cst_118 = arith.constant 3.200000e+01 : f32
    %273 = vector.broadcast %cst_118 : f32 to vector<8x1xf32>
    %274 = arith.divf %272, %273 : vector<8x1xf32>
    %275 = vector.broadcast %274 : vector<8x1xf32> to vector<8x32xf32>
    %276 = arith.subf %270, %275 : vector<8x32xf32>
    %277 = arith.mulf %276, %276 : vector<8x32xf32>
    %cst_119 = arith.constant dense<0.000000e+00> : vector<8xf32>
    %278 = vector.multi_reduction <add>, %277, %cst_119 [1] : vector<8x32xf32> to vector<8xf32>
    %279 = vector.shape_cast %278 : vector<8xf32> to vector<8x1xf32>
    %cst_120 = arith.constant 3.200000e+01 : f32
    %280 = vector.broadcast %cst_120 : f32 to vector<8x1xf32>
    %281 = arith.divf %279, %280 : vector<8x1xf32>
    %c9 = arith.constant 9 : index
    %c0_121 = arith.constant 0 : index
    %282 = vector.load %arg14[%c9, %c0_121] : memref<11x32xf32, #tpu.memory_space<vmem>>, vector<1x32xf32>
    %cst_122 = arith.constant 9.99999974E-6 : f32
    %283 = vector.broadcast %cst_122 : f32 to vector<8x1xf32>
    %284 = arith.addf %281, %283 : vector<8x1xf32>
    %285 = math.rsqrt %284 : vector<8x1xf32>
    %286 = vector.broadcast %285 : vector<8x1xf32> to vector<8x32xf32>
    %287 = arith.mulf %276, %286 : vector<8x32xf32>
    %288 = vector.broadcast %282 : vector<1x32xf32> to vector<8x32xf32>
    %289 = arith.mulf %288, %287 : vector<8x32xf32>
    %c10 = arith.constant 10 : index
    %c0_123 = arith.constant 0 : index
    %290 = vector.load %arg14[%c10, %c0_123] : memref<11x32xf32, #tpu.memory_space<vmem>>, vector<1x32xf32>
    %291 = vector.broadcast %290 : vector<1x32xf32> to vector<8x32xf32>
    %292 = arith.addf %289, %291 : vector<8x32xf32>
    %c0_124 = arith.constant 0 : index
    %c0_125 = arith.constant 0 : index
    %c0_126 = arith.constant 0 : index
    %293 = vector.load %arg15[%c0_124, %c0_125, %c0_126] : memref<1x8x32xf32, #tpu.memory_space<vmem>>, vector<1x8x32xf32>
    %294 = vector.shape_cast %293 : vector<1x8x32xf32> to vector<8x32xf32>
    %295 = vector.shape_cast %292 : vector<8x32xf32> to vector<1x8x32xf32>
    tpu.vector_store %arg15[%c0_124, %c0_125, %c0_126], %295 {strides = array<i32>} : memref<1x8x32xf32, #tpu.memory_space<vmem>>, vector<1x8x32xf32>,
    return
  }
  func.func @transform_0(%arg0: i32) -> (i32, i32, i32) {
    %c0_i32 = arith.constant 0 : i32
    %c0_i32_0 = arith.constant 0 : i32
    %c0_i32_1 = arith.constant 0 : i32
    return %arg0, %c0_i32, %c0_i32_0 : i32, i32, i32
  }
  func.func @transform_1(%arg0: i32) -> (i32, i32, i32) {
    %c0_i32 = arith.constant 0 : i32
    %c0_i32_0 = arith.constant 0 : i32
    %c0_i32_1 = arith.constant 0 : i32
    return %arg0, %c0_i32, %c0_i32_0 : i32, i32, i32
  }
  func.func @transform_2(%arg0: i32) -> (i32, i32) {
    %c0_i32 = arith.constant 0 : i32
    %c0_i32_0 = arith.constant 0 : i32
    %c0_i32_1 = arith.constant 0 : i32
    return %c0_i32, %c0_i32_0 : i32, i32
  }
  func.func @transform_3(%arg0: i32) -> (i32, i32) {
    %c0_i32 = arith.constant 0 : i32
    %c0_i32_0 = arith.constant 0 : i32
    %c0_i32_1 = arith.constant 0 : i32
    return %c0_i32, %c0_i32_0 : i32, i32
  }
  func.func @transform_4(%arg0: i32) -> (i32, i32) {
    %c0_i32 = arith.constant 0 : i32
    %c0_i32_0 = arith.constant 0 : i32
    %c0_i32_1 = arith.constant 0 : i32
    return %c0_i32, %c0_i32_0 : i32, i32
  }
  func.func @transform_5(%arg0: i32) -> (i32, i32) {
    %c0_i32 = arith.constant 0 : i32
    %c0_i32_0 = arith.constant 0 : i32
    %c0_i32_1 = arith.constant 0 : i32
    return %c0_i32, %c0_i32_0 : i32, i32
  }
  func.func @transform_6(%arg0: i32) -> (i32, i32) {
    %c0_i32 = arith.constant 0 : i32
    %c0_i32_0 = arith.constant 0 : i32
    %c0_i32_1 = arith.constant 0 : i32
    return %c0_i32, %c0_i32_0 : i32, i32
  }
  func.func @transform_7(%arg0: i32) -> (i32, i32) {
    %c0_i32 = arith.constant 0 : i32
    %c0_i32_0 = arith.constant 0 : i32
    %c0_i32_1 = arith.constant 0 : i32
    return %c0_i32, %c0_i32_0 : i32, i32
  }
  func.func @transform_8(%arg0: i32) -> (i32, i32) {
    %c0_i32 = arith.constant 0 : i32
    %c0_i32_0 = arith.constant 0 : i32
    %c0_i32_1 = arith.constant 0 : i32
    return %c0_i32, %c0_i32_0 : i32, i32
  }
  func.func @transform_9(%arg0: i32) -> (i32, i32) {
    %c0_i32 = arith.constant 0 : i32
    %c0_i32_0 = arith.constant 0 : i32
    %c0_i32_1 = arith.constant 0 : i32
    return %c0_i32, %c0_i32_0 : i32, i32
  }
  func.func @transform_10(%arg0: i32) -> (i32, i32) {
    %c0_i32 = arith.constant 0 : i32
    %c0_i32_0 = arith.constant 0 : i32
    %c0_i32_1 = arith.constant 0 : i32
    return %c0_i32, %c0_i32_0 : i32, i32
  }
  func.func @transform_11(%arg0: i32) -> (i32, i32) {
    %c0_i32 = arith.constant 0 : i32
    %c0_i32_0 = arith.constant 0 : i32
    %c0_i32_1 = arith.constant 0 : i32
    return %c0_i32, %c0_i32_0 : i32, i32
  }
  func.func @transform_12(%arg0: i32) -> (i32, i32) {
    %c0_i32 = arith.constant 0 : i32
    %c0_i32_0 = arith.constant 0 : i32
    %c0_i32_1 = arith.constant 0 : i32
    return %c0_i32, %c0_i32_0 : i32, i32
  }
  func.func @transform_13(%arg0: i32) -> (i32, i32) {
    %c0_i32 = arith.constant 0 : i32
    %c0_i32_0 = arith.constant 0 : i32
    %c0_i32_1 = arith.constant 0 : i32
    return %c0_i32, %c0_i32_0 : i32, i32
  }
  func.func @transform_14(%arg0: i32) -> (i32, i32, i32) {
    %c0_i32 = arith.constant 0 : i32
    %c0_i32_0 = arith.constant 0 : i32
    %c0_i32_1 = arith.constant 0 : i32
    return %arg0, %c0_i32, %c0_i32_0 : i32, i32, i32
  }
}

</mosaic_0001>

<llo_original>
// kernel: tpu_custom_call.1
$region0: #{tpu_custom_call.1}
  #allocation0 [shape = 'u32[]', space=smem, size = 0x4, offset = 0x4, fixed_abs, tag = 'smem constant byte address 0x4 - core index']
  #allocation1 [shape = 'u32[144,128]{1,0:T(1,128)}', space=vmem, size = 0x12000, scoped, tag = 'internal scratch']
  #allocation2 [shape = 'f32[32,8]{1,0:T(8,128)}', space=vmem, size = 0x4000, scoped, tag = 'scratch operand']
  %s0 = inlined_call_operand.vmem [shape: f32[2,8,32], index: 0, kind: input, shape index: {}]
  %s1 = inlined_call_operand.vmem [shape: f32[2,8,16], index: 1, kind: input, shape index: {}]
  %s2 = inlined_call_operand.hbm [shape: bf16[16,32], index: 2, kind: input, shape index: {}]
  %s3 = inlined_call_operand.vmem [shape: bf16[32,96], index: 3, kind: input, shape index: {}]
  %s4 = inlined_call_operand.hbm [shape: bf16[32,32], index: 4, kind: input, shape index: {}]
  %s5 = inlined_call_operand.hbm [shape: bf16[32,64], index: 5, kind: input, shape index: {}]
  %s6 = inlined_call_operand.hbm [shape: bf16[32,32], index: 6, kind: input, shape index: {}]
  %s7 = inlined_call_operand.hbm [shape: bf16[32,32], index: 7, kind: input, shape index: {}]
  %s8 = inlined_call_operand.hbm [shape: bf16[32,64], index: 8, kind: input, shape index: {}]
  %s9 = inlined_call_operand.vmem [shape: bf16[64,32], index: 9, kind: input, shape index: {}]
  %s10 = inlined_call_operand.vmem [shape: f32[1,96], index: 10, kind: input, shape index: {}]
  %s11 = inlined_call_operand.vmem [shape: f32[1,64], index: 11, kind: input, shape index: {}]
  %s12 = inlined_call_operand.vmem [shape: f32[1,64], index: 12, kind: input, shape index: {}]
  %s13 = inlined_call_operand.vmem [shape: f32[11,32], index: 13, kind: input, shape index: {}]
  %s14 = inlined_call_operand.hbm [shape: f32[2,8,32], index: 14, kind: output, shape index: {}]
  %s15 = sld [smem:[#allocation0]]
  $region113: #{tpu_custom_call.1} parent=0
    _
  %s17 = ssub.s32 1, %s15
  %s18 = scalar_select 0, %s17, %s15
  $region1: #{tpu_custom_call.1} parent=0
    #allocation3 [shape = 'u8[4096]{0}', space=vmem, size = 0x1000, scoped, tag = 'input window, operand 2, single buffered']
    #allocation4 [shape = 's32[2]{0}', space=sflag, size = 0x8, scoped, tag = 'scoped memory for tpu_custom_call.1']
    #allocation5 [shape = 's32[2]{0}', space=sflag, size = 0x8, scoped, tag = 'scoped memory for tpu_custom_call.1']
    #allocation6 [shape = 'u8[8192]{0}', space=vmem, size = 0x2000, scoped, tag = 'input window, operand 4, single buffered']
    #allocation7 [shape = 's32[1]{0}', space=sflag, size = 0x4, scoped, tag = 'scoped memory for tpu_custom_call.1']
    #allocation8 [shape = 'u8[8192]{0}', space=vmem, size = 0x2000, scoped, tag = 'input window, operand 5, single buffered']
    #allocation9 [shape = 'u8[8192]{0}', space=vmem, size = 0x2000, scoped, tag = 'input window, operand 6, single buffered']
    #allocation10 [shape = 's32[1]{0}', space=sflag, size = 0x4, scoped, tag = 'scoped memory for tpu_custom_call.1']
    #allocation11 [shape = 'u8[8192]{0}', space=vmem, size = 0x2000, scoped, tag = 'input window, operand 7, single buffered']
    #allocation12 [shape = 'u8[8192]{0}', space=vmem, size = 0x2000, scoped, tag = 'input window, operand 8, single buffered']
    #allocation13 [shape = 's32[1]{0}', space=sflag, size = 0x4, scoped, tag = 'scoped memory for tpu_custom_call.1']
    #allocation14 [shape = 'u8[8192]{0}', space=vmem, size = 0x2000, scoped, tag = 'output window, operand 0']
    %19 = vsyncpa [#allocation4], 0
    %20 = vsyncpa [#allocation7], 0
    %21 = vsyncpa [#allocation10], 0
    %22 = vsyncpa [#allocation13], 0
    %23 = vsyncpa [#allocation5], 0
    %s24 = scalar_lea.sflag [#allocation5], 1
    %25 = vsyncpa %s24, 0
    loop: start=0, step=1, limit=4
    $region2: #{tpu_custom_call.1} parent=1 // loop_pre_header
      _
    $region3: #{tpu_custom_call.1} parent=1 // loop_header
      %s27 = sphi 0, %s31
      %p28 = scmp.ge.s32.totalorder %s27, 4
      %s37 = sphi 0, %s39
      %s40 = sphi 0, %s37
      %s41 = sphi 0, %s40
      %s57 = sphi 0, %s41
      %s63 = sphi 0, %s65
      %s66 = sphi 0, %s63
      %s67 = sphi 0, %s66
      %s83 = sphi 0, %s67
      %s87 = sphi 0, %s87
      %s89 = sphi 0, %s87
      %s90 = sphi 0, %s89
      %s104 = sphi 0, %s90
      %s108 = sphi 0, %s108
      %s110 = sphi 0, %s108
      %s111 = sphi 0, %s110
      %s125 = sphi 0, %s111
      %s129 = sphi 0, %s129
      %s131 = sphi 0, %s129
      %s132 = sphi 0, %s131
      %s146 = sphi 0, %s132
      %s150 = sphi 0, %s150
      %s152 = sphi 0, %s150
      %s153 = sphi 0, %s152
      %s167 = sphi 0, %s153
      %s171 = sphi 0, %s171
      %s173 = sphi 0, %s171
      %s174 = sphi 0, %s173
      %s188 = sphi 0, %s174
      %s192 = sphi 0, %s192
      %s194 = sphi 0, %s192
      %s195 = sphi 0, %s194
      %s209 = sphi 0, %s195
      %s213 = sphi 0, %s213
      %s215 = sphi 0, %s213
      %s216 = sphi 0, %s215
      %s230 = sphi 0, %s216
      %s234 = sphi 0, %s234
      %s236 = sphi 0, %s234
      %s237 = sphi 0, %s236
      %s251 = sphi 0, %s237
      %s255 = sphi 0, %s255
      %s257 = sphi 0, %s255
      %s258 = sphi 0, %s257
      %s272 = sphi 0, %s258
      %s276 = sphi 0, %s276
      %s278 = sphi 0, %s276
      %s279 = sphi 0, %s278
      %s293 = sphi 0, %s279
      %s297 = sphi 0, %s297
      %s299 = sphi 0, %s297
      %s300 = sphi 0, %s299
      %s314 = sphi 0, %s300
      %s318 = sphi 0, %s318
      %s320 = sphi 0, %s318
      %s321 = sphi 0, %s320
      %s335 = sphi 0, %s321
      %s341 = sphi 0, %s343
      %s344 = sphi 0, %s341
      %s345 = sphi 0, %s344
      %s361 = sphi 0, %s345
    $region4: #{tpu_custom_call.1} parent=1 // loop_header_branch
      %30 = sbr.rel (%p28) target = $region8
    $region5: #{tpu_custom_call.1} parent=1 // loop_body
      %s32 = ssub.s32 %s27, 1
      %s33 = ssub.s32 %s27, 2
      %s34 = sadd.s32 %s27, 1
      %s35 = ssub.s32 %s27, %s34
      %p36 = scmp.eq.s32.totalorder %s35, 0
      %s38 = sadd.s32 %s37, 1
      %s39 = scalar_select %p36, %s37, %s38
      %p42 = pneg %p36
      %p43 = scmp.eq.s32.totalorder %s27, 1
      %p44 = por %p42, %p43
      %p45 = scmp.ne.s32.totalorder %s37, %s40
      %p46 = scmp.eq.s32.totalorder %s27, 0
      %p47 = por %p45, %p46
      %p48 = scmp.ne.s32.totalorder %s37, %s40
      %p49 = scmp.eq.s32.totalorder %s32, 1
      %p50 = por %p48, %p49
      %p51 = scmp.ne.s32.totalorder %s40, %s41
      %p52 = scmp.eq.s32.totalorder %s32, 0
      %p53 = por %p51, %p52
      %p54 = scmp.ne.s32.totalorder %s40, %s41
      %p55 = scmp.eq.s32.totalorder %s33, 1
      %p56 = por %p54, %p55
      %p58 = scmp.ne.s32.totalorder %s41, %s57
      %p59 = scmp.eq.s32.totalorder %s33, 0
      %p60 = por %p58, %p59
      %s61 = ssub.s32 %s27, %s34
      %p62 = scmp.eq.s32.totalorder %s61, 0
      %s64 = sadd.s32 %s63, 1
      %s65 = scalar_select %p62, %s63, %s64
      %p68 = pneg %p62
      %p69 = scmp.eq.s32.totalorder %s27, 1
      %p70 = por %p68, %p69
      %p71 = scmp.ne.s32.totalorder %s63, %s66
      %p72 = scmp.eq.s32.totalorder %s27, 0
      %p73 = por %p71, %p72
      %p74 = scmp.ne.s32.totalorder %s63, %s66
      %p75 = scmp.eq.s32.totalorder %s32, 1
      %p76 = por %p74, %p75
      %p77 = scmp.ne.s32.totalorder %s66, %s67
      %p78 = scmp.eq.s32.totalorder %s32, 0
      %p79 = por %p77, %p78
      %p80 = scmp.ne.s32.totalorder %s66, %s67
      %p81 = scmp.eq.s32.totalorder %s33, 1
      %p82 = por %p80, %p81
      %p84 = scmp.ne.s32.totalorder %s67, %s83
      %p85 = scmp.eq.s32.totalorder %s33, 0
      %p86 = por %p84, %p85
      %s88 = sadd.s32 %s87, 1
      %p91 = scmp.eq.s32.totalorder %s27, 1
      %p92 = scmp.ne.s32.totalorder %s87, %s89
      %p93 = scmp.eq.s32.totalorder %s27, 0
      %p94 = por %p92, %p93
      %p95 = scmp.ne.s32.totalorder %s87, %s89
      %p96 = scmp.eq.s32.totalorder %s32, 1
      %p97 = por %p95, %p96
      %p98 = scmp.ne.s32.totalorder %s89, %s90
      %p99 = scmp.eq.s32.totalorder %s32, 0
      %p100 = por %p98, %p99
      %p101 = scmp.ne.s32.totalorder %s89, %s90
      %p102 = scmp.eq.s32.totalorder %s33, 1
      %p103 = por %p101, %p102
      %p105 = scmp.ne.s32.totalorder %s90, %s104
      %p106 = scmp.eq.s32.totalorder %s33, 0
      %p107 = por %p105, %p106
      %s109 = sadd.s32 %s108, 1
      %p112 = scmp.eq.s32.totalorder %s27, 1
      %p113 = scmp.ne.s32.totalorder %s108, %s110
      %p114 = scmp.eq.s32.totalorder %s27, 0
      %p115 = por %p113, %p114
      %p116 = scmp.ne.s32.totalorder %s108, %s110
      %p117 = scmp.eq.s32.totalorder %s32, 1
      %p118 = por %p116, %p117
      %p119 = scmp.ne.s32.totalorder %s110, %s111
      %p120 = scmp.eq.s32.totalorder %s32, 0
      %p121 = por %p119, %p120
      %p122 = scmp.ne.s32.totalorder %s110, %s111
      %p123 = scmp.eq.s32.totalorder %s33, 1
      %p124 = por %p122, %p123
      %p126 = scmp.ne.s32.totalorder %s111, %s125
      %p127 = scmp.eq.s32.totalorder %s33, 0
      %p128 = por %p126, %p127
      %s130 = sadd.s32 %s129, 1
      %p133 = scmp.eq.s32.totalorder %s27, 1
      %p134 = scmp.ne.s32.totalorder %s129, %s131
      %p135 = scmp.eq.s32.totalorder %s27, 0
      %p136 = por %p134, %p135
      %p137 = scmp.ne.s32.totalorder %s129, %s131
      %p138 = scmp.eq.s32.totalorder %s32, 1
      %p139 = por %p137, %p138
      %p140 = scmp.ne.s32.totalorder %s131, %s132
      %p141 = scmp.eq.s32.totalorder %s32, 0
      %p142 = por %p140, %p141
      %p143 = scmp.ne.s32.totalorder %s131, %s132
      %p144 = scmp.eq.s32.totalorder %s33, 1
      %p145 = por %p143, %p144
      %p147 = scmp.ne.s32.totalorder %s132, %s146
      %p148 = scmp.eq.s32.totalorder %s33, 0
      %p149 = por %p147, %p148
      %s151 = sadd.s32 %s150, 1
      %p154 = scmp.eq.s32.totalorder %s27, 1
      %p155 = scmp.ne.s32.totalorder %s150, %s152
      %p156 = scmp.eq.s32.totalorder %s27, 0
      %p157 = por %p155, %p156
      %p158 = scmp.ne.s32.totalorder %s150, %s152
      %p159 = scmp.eq.s32.totalorder %s32, 1
      %p160 = por %p158, %p159
      %p161 = scmp.ne.s32.totalorder %s152, %s153
      %p162 = scmp.eq.s32.totalorder %s32, 0
      %p163 = por %p161, %p162
      %p164 = scmp.ne.s32.totalorder %s152, %s153
      %p165 = scmp.eq.s32.totalorder %s33, 1
      %p166 = por %p164, %p165
      %p168 = scmp.ne.s32.totalorder %s153, %s167
      %p169 = scmp.eq.s32.totalorder %s33, 0
      %p170 = por %p168, %p169
      %s172 = sadd.s32 %s171, 1
      %p175 = scmp.eq.s32.totalorder %s27, 1
      %p176 = scmp.ne.s32.totalorder %s171, %s173
      %p177 = scmp.eq.s32.totalorder %s27, 0
      %p178 = por %p176, %p177
      %p179 = scmp.ne.s32.totalorder %s171, %s173
      %p180 = scmp.eq.s32.totalorder %s32, 1
      %p181 = por %p179, %p180
      %p182 = scmp.ne.s32.totalorder %s173, %s174
      %p183 = scmp.eq.s32.totalorder %s32, 0
      %p184 = por %p182, %p183
      %p185 = scmp.ne.s32.totalorder %s173, %s174
      %p186 = scmp.eq.s32.totalorder %s33, 1
      %p187 = por %p185, %p186
      %p189 = scmp.ne.s32.totalorder %s174, %s188
      %p190 = scmp.eq.s32.totalorder %s33, 0
      %p191 = por %p189, %p190
      %s193 = sadd.s32 %s192, 1
      %p196 = scmp.eq.s32.totalorder %s27, 1
      %p197 = scmp.ne.s32.totalorder %s192, %s194
      %p198 = scmp.eq.s32.totalorder %s27, 0
      %p199 = por %p197, %p198
      %p200 = scmp.ne.s32.totalorder %s192, %s194
      %p201 = scmp.eq.s32.totalorder %s32, 1
      %p202 = por %p200, %p201
      %p203 = scmp.ne.s32.totalorder %s194, %s195
      %p204 = scmp.eq.s32.totalorder %s32, 0
      %p205 = por %p203, %p204
      %p206 = scmp.ne.s32.totalorder %s194, %s195
      %p207 = scmp.eq.s32.totalorder %s33, 1
      %p208 = por %p206, %p207
      %p210 = scmp.ne.s32.totalorder %s195, %s209
      %p211 = scmp.eq.s32.totalorder %s33, 0
      %p212 = por %p210, %p211
      %s214 = sadd.s32 %s213, 1
      %p217 = scmp.eq.s32.totalorder %s27, 1
      %p218 = scmp.ne.s32.totalorder %s213, %s215
      %p219 = scmp.eq.s32.totalorder %s27, 0
      %p220 = por %p218, %p219
      %p221 = scmp.ne.s32.totalorder %s213, %s215
      %p222 = scmp.eq.s32.totalorder %s32, 1
      %p223 = por %p221, %p222
      %p224 = scmp.ne.s32.totalorder %s215, %s216
      %p225 = scmp.eq.s32.totalorder %s32, 0
      %p226 = por %p224, %p225
      %p227 = scmp.ne.s32.totalorder %s215, %s216
      %p228 = scmp.eq.s32.totalorder %s33, 1
      %p229 = por %p227, %p228
      %p231 = scmp.ne.s32.totalorder %s216, %s230
      %p232 = scmp.eq.s32.totalorder %s33, 0
      %p233 = por %p231, %p232
      %s235 = sadd.s32 %s234, 1
      %p238 = scmp.eq.s32.totalorder %s27, 1
      %p239 = scmp.ne.s32.totalorder %s234, %s236
      %p240 = scmp.eq.s32.totalorder %s27, 0
      %p241 = por %p239, %p240
      %p242 = scmp.ne.s32.totalorder %s234, %s236
      %p243 = scmp.eq.s32.totalorder %s32, 1
      %p244 = por %p242, %p243
      %p245 = scmp.ne.s32.totalorder %s236, %s237
      %p246 = scmp.eq.s32.totalorder %s32, 0
      %p247 = por %p245, %p246
      %p248 = scmp.ne.s32.totalorder %s236, %s237
      %p249 = scmp.eq.s32.totalorder %s33, 1
      %p250 = por %p248, %p249
      %p252 = scmp.ne.s32.totalorder %s237, %s251
      %p253 = scmp.eq.s32.totalorder %s33, 0
      %p254 = por %p252, %p253
      %s256 = sadd.s32 %s255, 1
      %p259 = scmp.eq.s32.totalorder %s27, 1
      %p260 = scmp.ne.s32.totalorder %s255, %s257
      %p261 = scmp.eq.s32.totalorder %s27, 0
      %p262 = por %p260, %p261
      %p263 = scmp.ne.s32.totalorder %s255, %s257
      %p264 = scmp.eq.s32.totalorder %s32, 1
      %p265 = por %p263, %p264
      %p266 = scmp.ne.s32.totalorder %s257, %s258
      %p267 = scmp.eq.s32.totalorder %s32, 0
      %p268 = por %p266, %p267
      %p269 = scmp.ne.s32.totalorder %s257, %s258
      %p270 = scmp.eq.s32.totalorder %s33, 1
      %p271 = por %p269, %p270
      %p273 = scmp.ne.s32.totalorder %s258, %s272
      %p274 = scmp.eq.s32.totalorder %s33, 0
      %p275 = por %p273, %p274
      %s277 = sadd.s32 %s276, 1
      %p280 = scmp.eq.s32.totalorder %s27, 1
      %p281 = scmp.ne.s32.totalorder %s276, %s278
      %p282 = scmp.eq.s32.totalorder %s27, 0
      %p283 = por %p281, %p282
      %p284 = scmp.ne.s32.totalorder %s276, %s278
      %p285 = scmp.eq.s32.totalorder %s32, 1
      %p286 = por %p284, %p285
      %p287 = scmp.ne.s32.totalorder %s278, %s279
      %p288 = scmp.eq.s32.totalorder %s32, 0
      %p289 = por %p287, %p288
      %p290 = scmp.ne.s32.totalorder %s278, %s279
      %p291 = scmp.eq.s32.totalorder %s33, 1
      %p292 = por %p290, %p291
      %p294 = scmp.ne.s32.totalorder %s279, %s293
      %p295 = scmp.eq.s32.totalorder %s33, 0
      %p296 = por %p294, %p295
      %s298 = sadd.s32 %s297, 1
      %p301 = scmp.eq.s32.totalorder %s27, 1
      %p302 = scmp.ne.s32.totalorder %s297, %s299
      %p303 = scmp.eq.s32.totalorder %s27, 0
      %p304 = por %p302, %p303
      %p305 = scmp.ne.s32.totalorder %s297, %s299
      %p306 = scmp.eq.s32.totalorder %s32, 1
      %p307 = por %p305, %p306
      %p308 = scmp.ne.s32.totalorder %s299, %s300
      %p309 = scmp.eq.s32.totalorder %s32, 0
      %p310 = por %p308, %p309
      %p311 = scmp.ne.s32.totalorder %s299, %s300
      %p312 = scmp.eq.s32.totalorder %s33, 1
      %p313 = por %p311, %p312
      %p315 = scmp.ne.s32.totalorder %s300, %s314
      %p316 = scmp.eq.s32.totalorder %s33, 0
      %p317 = por %p315, %p316
      %s319 = sadd.s32 %s318, 1
      %p322 = scmp.eq.s32.totalorder %s27, 1
      %p323 = scmp.ne.s32.totalorder %s318, %s320
      %p324 = scmp.eq.s32.totalorder %s27, 0
      %p325 = por %p323, %p324
      %p326 = scmp.ne.s32.totalorder %s318, %s320
      %p327 = scmp.eq.s32.totalorder %s32, 1
      %p328 = por %p326, %p327
      %p329 = scmp.ne.s32.totalorder %s320, %s321
      %p330 = scmp.eq.s32.totalorder %s32, 0
      %p331 = por %p329, %p330
      %p332 = scmp.ne.s32.totalorder %s320, %s321
      %p333 = scmp.eq.s32.totalorder %s33, 1
      %p334 = por %p332, %p333
      %p336 = scmp.ne.s32.totalorder %s321, %s335
      %p337 = scmp.eq.s32.totalorder %s33, 0
      %p338 = por %p336, %p337
      %s339 = ssub.s32 %s27, %s34
      %p340 = scmp.eq.s32.totalorder %s339, 0
      %s342 = sadd.s32 %s341, 1
      %s343 = scalar_select %p340, %s341, %s342
      %p346 = pneg %p340
      %p347 = scmp.eq.s32.totalorder %s27, 1
      %p348 = por %p346, %p347
      %p349 = scmp.ne.s32.totalorder %s341, %s344
      %p350 = scmp.eq.s32.totalorder %s27, 0
      %p351 = por %p349, %p350
      %p352 = scmp.ne.s32.totalorder %s341, %s344
      %p353 = scmp.eq.s32.totalorder %s32, 1
      %p354 = por %p352, %p353
      %p355 = scmp.ne.s32.totalorder %s344, %s345
      %p356 = scmp.eq.s32.totalorder %s32, 0
      %p357 = por %p355, %p356
      %p358 = scmp.ne.s32.totalorder %s344, %s345
      %p359 = scmp.eq.s32.totalorder %s33, 1
      %p360 = por %p358, %p359
      %p362 = scmp.ne.s32.totalorder %s345, %s361
      %p363 = scmp.eq.s32.totalorder %s33, 0
      %p364 = por %p362, %p363
      %p365 = scmp.le.s32.totalorder 1, %s27
      %p366 = scmp.lt.s32.totalorder %s27, 3
      %p367 = pnand %p365, %p366
      %p368 = pneg %p367
      // Predicated region
      $region9: #{tpu_custom_call.1} parent=5 // pred_check
        _
      $region10: #{tpu_custom_call.1} parent=5 // pred_check_branch
        %370 = sbr.rel (%p367) target = $region12
      $region11: #{tpu_custom_call.1} parent=5 // pred_region
        %s371 = ssub.s32 %s27, 1
        // Predicated region
        $region13: #{tpu_custom_call.1} parent=11 // pred_check
          %p372 = pneg %p100
        $region14: #{tpu_custom_call.1} parent=11 // pred_check_branch
          %374 = sbr.rel (%p372) target = $region16
        $region15: #{tpu_custom_call.1} parent=11 // pred_region
          %s376 = ssub.s32 128, 128
          %377 = vsyncadd [#allocation4], %s376
          %s378 = sshll.u32 [#allocation3], 4
          %s379 = int_to_ptr.vmem [resolvable:$true] %s378
          %384 = dma.hbm_to_vmem [thread:$0]  %s2, 128, %s379, [#allocation4], 64, 64, 4
        $region16: #{tpu_custom_call.1} parent=11 // pred_fallthru
          _
        // Predicated region
        $region17: #{tpu_custom_call.1} parent=11 // pred_check
          %p385 = pneg %p121
        $region18: #{tpu_custom_call.1} parent=11 // pred_check_branch
          %387 = sbr.rel (%p385) target = $region20
        $region19: #{tpu_custom_call.1} parent=11 // pred_region
          _
        $region20: #{tpu_custom_call.1} parent=11 // pred_fallthru
          _
        // Predicated region
        $region21: #{tpu_custom_call.1} parent=11 // pred_check
          %p388 = pneg %p142
        $region22: #{tpu_custom_call.1} parent=11 // pred_check_branch
          %390 = sbr.rel (%p388) target = $region24
        $region23: #{tpu_custom_call.1} parent=11 // pred_region
          %s392 = ssub.s32 256, 256
          %393 = vsyncadd [#allocation7], %s392
          %s394 = sshll.u32 [#allocation6], 4
          %s395 = int_to_ptr.vmem [resolvable:$true] %s394
          %400 = dma.hbm_to_vmem [thread:$0]  %s4, 256, %s395, [#allocation7], 64, 64, 4
        $region24: #{tpu_custom_call.1} parent=11 // pred_fallthru
          _
        // Predicated region
        $region25: #{tpu_custom_call.1} parent=11 // pred_check
          %p401 = pneg %p163
        $region26: #{tpu_custom_call.1} parent=11 // pred_check_branch
          %403 = sbr.rel (%p401) target = $region28
        $region27: #{tpu_custom_call.1} parent=11 // pred_region
          %s405 = ssub.s32 256, 256
          %406 = vsyncadd [#allocation7], %s405
          %s407 = sshll.u32 [#allocation8], 4
          %s408 = int_to_ptr.vmem [resolvable:$true] %s407
          %413 = dma.hbm_to_vmem [thread:$0]  %s5, 256, %s408, [#allocation7], 64, 64, 4
        $region28: #{tpu_custom_call.1} parent=11 // pred_fallthru
          _
        // Predicated region
        $region29: #{tpu_custom_call.1} parent=11 // pred_check
          %p414 = pneg %p184
        $region30: #{tpu_custom_call.1} parent=11 // pred_check_branch
          %416 = sbr.rel (%p414) target = $region32
        $region31: #{tpu_custom_call.1} parent=11 // pred_region
          %s418 = ssub.s32 256, 256
          %419 = vsyncadd [#allocation10], %s418
          %s420 = sshll.u32 [#allocation9], 4
          %s421 = int_to_ptr.vmem [resolvable:$true] %s420
          %426 = dma.hbm_to_vmem [thread:$0]  %s6, 256, %s421, [#allocation10], 64, 64, 4
        $region32: #{tpu_custom_call.1} parent=11 // pred_fallthru
          _
        // Predicated region
        $region33: #{tpu_custom_call.1} parent=11 // pred_check
          %p427 = pneg %p205
        $region34: #{tpu_custom_call.1} parent=11 // pred_check_branch
          %429 = sbr.rel (%p427) target = $region36
        $region35: #{tpu_custom_call.1} parent=11 // pred_region
          %s431 = ssub.s32 256, 256
          %432 = vsyncadd [#allocation10], %s431
          %s433 = sshll.u32 [#allocation11], 4
          %s434 = int_to_ptr.vmem [resolvable:$true] %s433
          %439 = dma.hbm_to_vmem [thread:$0]  %s7, 256, %s434, [#allocation10], 64, 64, 4
        $region36: #{tpu_custom_call.1} parent=11 // pred_fallthru
          _
        // Predicated region
        $region37: #{tpu_custom_call.1} parent=11 // pred_check
          %p440 = pneg %p226
        $region38: #{tpu_custom_call.1} parent=11 // pred_check_branch
          %442 = sbr.rel (%p440) target = $region40
        $region39: #{tpu_custom_call.1} parent=11 // pred_region
          %s444 = ssub.s32 256, 256
          %445 = vsyncadd [#allocation13], %s444
          %s446 = sshll.u32 [#allocation12], 4
          %s447 = int_to_ptr.vmem [resolvable:$true] %s446
          %452 = dma.hbm_to_vmem [thread:$0]  %s8, 256, %s447, [#allocation13], 64, 64, 4
        $region40: #{tpu_custom_call.1} parent=11 // pred_fallthru
          _
        // Predicated region
        $region41: #{tpu_custom_call.1} parent=11 // pred_check
          %p453 = pneg %p247
        $region42: #{tpu_custom_call.1} parent=11 // pred_check_branch
          %455 = sbr.rel (%p453) target = $region44
        $region43: #{tpu_custom_call.1} parent=11 // pred_region
          _
        $region44: #{tpu_custom_call.1} parent=11 // pred_fallthru
          _
        // Predicated region
        $region45: #{tpu_custom_call.1} parent=11 // pred_check
          %p456 = pneg %p268
        $region46: #{tpu_custom_call.1} parent=11 // pred_check_branch
          %458 = sbr.rel (%p456) target = $region48
        $region47: #{tpu_custom_call.1} parent=11 // pred_region
          _
        $region48: #{tpu_custom_call.1} parent=11 // pred_fallthru
          _
        // Predicated region
        $region49: #{tpu_custom_call.1} parent=11 // pred_check
          %p459 = pneg %p289
        $region50: #{tpu_custom_call.1} parent=11 // pred_check_branch
          %461 = sbr.rel (%p459) target = $region52
        $region51: #{tpu_custom_call.1} parent=11 // pred_region
          _
        $region52: #{tpu_custom_call.1} parent=11 // pred_fallthru
          _
        // Predicated region
        $region53: #{tpu_custom_call.1} parent=11 // pred_check
          %p462 = pneg %p310
        $region54: #{tpu_custom_call.1} parent=11 // pred_check_branch
          %464 = sbr.rel (%p462) target = $region56
        $region55: #{tpu_custom_call.1} parent=11 // pred_region
          _
        $region56: #{tpu_custom_call.1} parent=11 // pred_fallthru
          _
        // Predicated region
        $region57: #{tpu_custom_call.1} parent=11 // pred_check
          %p465 = pneg %p331
        $region58: #{tpu_custom_call.1} parent=11 // pred_check_branch
          %467 = sbr.rel (%p465) target = $region60
        $region59: #{tpu_custom_call.1} parent=11 // pred_region
          _
        $region60: #{tpu_custom_call.1} parent=11 // pred_fallthru
          _
      $region12: #{tpu_custom_call.1} parent=5 // pred_fallthru
        _
      %p468 = scmp.lt.s32.totalorder %s27, 2
      // Predicated region
      $region61: #{tpu_custom_call.1} parent=5 // pred_check
        %p469 = pneg %p468
      $region62: #{tpu_custom_call.1} parent=5 // pred_check_branch
        %471 = sbr.rel (%p469) target = $region64
      $region63: #{tpu_custom_call.1} parent=5 // pred_region
        // Predicated region
        $region65: #{tpu_custom_call.1} parent=63 // pred_check
          %p472 = pneg %p47
        $region66: #{tpu_custom_call.1} parent=63 // pred_check_branch
          %474 = sbr.rel (%p472) target = $region68
        $region67: #{tpu_custom_call.1} parent=63 // pred_region
          %p475 = scmp.lt.s32.totalorder %s27, 1
          %s476 = scalar_select %p475, %s27, 1
          %s477 = smul.addr %s476, 8
          %s478 = scalar_lea.vmem %s0, %s477
        $region68: #{tpu_custom_call.1} parent=63 // pred_fallthru
          _
        // Predicated region
        $region69: #{tpu_custom_call.1} parent=63 // pred_check
          %p479 = pneg %p73
        $region70: #{tpu_custom_call.1} parent=63 // pred_check_branch
          %481 = sbr.rel (%p479) target = $region72
        $region71: #{tpu_custom_call.1} parent=63 // pred_region
          %p482 = scmp.lt.s32.totalorder %s27, 1
          %s483 = scalar_select %p482, %s27, 1
          %s484 = smul.addr %s483, 8
          %s485 = scalar_lea.vmem %s1, %s484
        $region72: #{tpu_custom_call.1} parent=63 // pred_fallthru
          _
      $region64: #{tpu_custom_call.1} parent=5 // pred_fallthru
        _
      %p486 = scmp.le.s32.totalorder 1, %s27
      %p487 = scmp.lt.s32.totalorder %s27, 3
      %p488 = pnand %p486, %p487
      %p489 = pneg %p488
      // Predicated region
      $region73: #{tpu_custom_call.1} parent=5 // pred_check
        _
      $region74: #{tpu_custom_call.1} parent=5 // pred_check_branch
        %491 = sbr.rel (%p488) target = $region76
      $region75: #{tpu_custom_call.1} parent=5 // pred_region
        %s492 = ssub.s32 %s27, 1
        // Predicated region
        $region77: #{tpu_custom_call.1} parent=75 // pred_check
          %p493 = pneg %p100
        $region78: #{tpu_custom_call.1} parent=75 // pred_check_branch
          %495 = sbr.rel (%p493) target = $region80
        $region79: #{tpu_custom_call.1} parent=75 // pred_region
          %496 = dma.done [#allocation4], 128
        $region80: #{tpu_custom_call.1} parent=75 // pred_fallthru
          _
        // Predicated region
        $region81: #{tpu_custom_call.1} parent=75 // pred_check
          %p497 = pneg %p142
        $region82: #{tpu_custom_call.1} parent=75 // pred_check_branch
          %499 = sbr.rel (%p497) target = $region84
        $region83: #{tpu_custom_call.1} parent=75 // pred_region
          %500 = dma.done [#allocation7], 256
        $region84: #{tpu_custom_call.1} parent=75 // pred_fallthru
          _
        // Predicated region
        $region85: #{tpu_custom_call.1} parent=75 // pred_check
          %p501 = pneg %p163
        $region86: #{tpu_custom_call.1} parent=75 // pred_check_branch
          %503 = sbr.rel (%p501) target = $region88
        $region87: #{tpu_custom_call.1} parent=75 // pred_region
          %504 = dma.done [#allocation7], 256
        $region88: #{tpu_custom_call.1} parent=75 // pred_fallthru
          _
        // Predicated region
        $region89: #{tpu_custom_call.1} parent=75 // pred_check
          %p505 = pneg %p184
        $region90: #{tpu_custom_call.1} parent=75 // pred_check_branch
          %507 = sbr.rel (%p505) target = $region92
        $region91: #{tpu_custom_call.1} parent=75 // pred_region
          %508 = dma.done [#allocation10], 256
        $region92: #{tpu_custom_call.1} parent=75 // pred_fallthru
          _
        // Predicated region
        $region93: #{tpu_custom_call.1} parent=75 // pred_check
          %p509 = pneg %p205
        $region94: #{tpu_custom_call.1} parent=75 // pred_check_branch
          %511 = sbr.rel (%p509) target = $region96
        $region95: #{tpu_custom_call.1} parent=75 // pred_region
          %512 = dma.done [#allocation10], 256
        $region96: #{tpu_custom_call.1} parent=75 // pred_fallthru
          _
        // Predicated region
        $region97: #{tpu_custom_call.1} parent=75 // pred_check
          %p513 = pneg %p226
        $region98: #{tpu_custom_call.1} parent=75 // pred_check_branch
          %515 = sbr.rel (%p513) target = $region100
        $region99: #{tpu_custom_call.1} parent=75 // pred_region
          %516 = dma.done [#allocation13], 256
        $region100: #{tpu_custom_call.1} parent=75 // pred_fallthru
          _
        %p517 = scmp.lt.s32.totalorder %s32, 1
        %s518 = scalar_select %p517, %s32, 1
        %s519 = smul.addr %s518, 8
        %s520 = scalar_lea.vmem %s0, %s519
        %p521 = pneg %p53
        %p522 = pneg %p50
        %p523 = scmp.lt.s32.totalorder %s32, 1
        %s524 = scalar_select %p523, %s32, 1
        %s525 = smul.addr %s524, 8
        %s526 = scalar_lea.vmem %s1, %s525
        %p527 = pneg %p79
        %p528 = pneg %p76
        %p529 = pneg %p100
        %p530 = pneg %p97
        %p531 = pneg %p121
        %p532 = pneg %p118
        %p533 = pneg %p142
        %p534 = pneg %p139
        %p535 = pneg %p163
        %p536 = pneg %p160
        %p537 = pneg %p184
        %p538 = pneg %p181
        %p539 = pneg %p205
        %p540 = pneg %p202
        %p541 = pneg %p226
        %p542 = pneg %p223
        %p543 = pneg %p247
        %p544 = pneg %p244
        %p545 = pneg %p268
        %p546 = pneg %p265
        %p547 = pneg %p289
        %p548 = pneg %p286
        %p549 = pneg %p310
        %p550 = pneg %p307
        %p551 = pneg %p331
        %p552 = pneg %p328
        %p553 = pneg %p357
        %p554 = pneg %p354
        %s555 = sand.u32 %s344, 1
        %s556 = scalar_lea.sflag [#allocation5], %s555
        %s557 = sand.u32 %s344, 1
        %s558 = smul.addr %s557, 8
        %s559 = scalar_lea.vmem [#allocation14], %s558
        %p560 = scmp.lt.s32.totalorder %s32, 1
        %s561 = scalar_select %p560, %s32, 1
        %s562 = smul.addr %s561, 8
        %s563 = scalar_lea.vmem %s0, %s562
        %p564 = scmp.lt.s32.totalorder %s32, 1
        %s565 = scalar_select %p564, %s32, 1
        %s566 = smul.addr %s565, 8
        %s567 = scalar_lea.vmem %s1, %s566
        %v569 = vld [vmem:[%s563] sm:$0xff]
        %v570 = vld [vmem:[%s567] sm:$0xff]
        %v571 = vld [vmem:[%s13] sm:$0x1]
        %v572 = vpack.c.bf16 %v570, %v570
        %v573 = vld [vmem:[#allocation3] sm:$0xf]
        %v574 = vld [vmem:[#allocation3 + $0x4] sm:$0xf]
        %v575 = vlaneseq
        %v576 = vshrl.u32 %v575, 7
        %v577 = vsub.s32 0, %v576
        %v578 = vrot.slane %v571, %v577
        %v581 = vunpack.c.l.b16 %v573
        %v582 = vunpack.c.l.b16 %v574
        %v583 = vpack.c.b16 %v582, %v581
        %vm585 = vcmask 130048
        %v587 = vsel %vm585, %v572, 0
        %589 = vmatprep.subr.bf16.mxu0 0
        %590 = vmatpush1.bf16.msra.mxu0 %v583
        %591 = vmatprep.subr.bf16.mxu0 0
        %592 = vmatpush1.bf16.msra.mxu0 0
        %593 = vmatprep.subr.bf16.mxu0 0
        %594 = vmatpush1.bf16.msra.mxu0 0
        %595 = vmatprep.subr.bf16.mxu0 0
        %596 = vmatpush1.bf16.msra.mxu0 0
        %597 = vmatprep.subr.bf16.mxu0 0
        %598 = vmatpush1.bf16.msra.mxu0 0
        %599 = vmatprep.subr.bf16.mxu0 0
        %600 = vmatpush1.bf16.msra.mxu0 0
        %601 = vmatprep.subr.bf16.mxu0 0
        %602 = vmatpush1.bf16.msra.mxu0 0
        %603 = vmatprep.subr.bf16.mxu0 0
        %604 = vmatpush1.bf16.msra.mxu0 0
        %605 = vmatprep.subr.bf16.mxu0 0
        %606 = vmatpush1.bf16.msra.mxu0 0
        %607 = vmatprep.subr.bf16.mxu0 0
        %608 = vmatpush1.bf16.msra.mxu0 0
        %609 = vmatprep.subr.bf16.mxu0 0
        %610 = vmatpush1.bf16.msra.mxu0 0
        %611 = vmatprep.subr.bf16.mxu0 0
        %612 = vmatpush1.bf16.msra.mxu0 0
        %613 = vmatprep.subr.bf16.mxu0 0
        %614 = vmatpush1.bf16.msra.mxu0 0
        %615 = vmatprep.subr.bf16.mxu0 0
        %616 = vmatpush1.bf16.msra.mxu0 0
        %617 = vmatprep.subr.bf16.mxu0 0
        %618 = vmatpush1.bf16.msra.mxu0 0
        %619 = vmatprep.subr.bf16.mxu0 0
        %620 = vmatpush1.bf16.msra.mxu0 0
        %621 = vmatprep.mubr.bf16.mxu0 0
        %622 = vmatmul.mubr.bf16.gmra.mrb[0].mxu0 %v587
        %v623 = vpop.f32.mrb[0].mxu0
        %v624 = vadd.f32 %v578, %v623
        %v625 = vpop.f32.mrb[0].mxu0
        %v626 = vpop.f32.mrb[0].mxu0
        %v627 = vpop.f32.mrb[0].mxu0
        %628 = vdwg.mxu0
        %v629 = vld [vmem:[%s10] sm:$0x1]
        %v630 = vpack.c.bf16 %v624, %v624
        %v631 = vld [vmem:[%s3] sm:$0xf]
        %v632 = vld [vmem:[%s3 + $0x4] sm:$0xf]
        %v633 = vld [vmem:[%s3 + $0x8] sm:$0xf]
        %v634 = vld [vmem:[%s3 + $0xc] sm:$0xf]
        %v636 = vlaneseq
        %v637 = vshrl.u32 %v636, 7
        %v638 = vsub.s32 0, %v637
        %v639 = vrot.slane %v629, %v638
        %v645 = vunpack.c.l.b16 %v631
        %v646 = vunpack.c.l.b16 %v632
        %v647 = vunpack.c.l.b16 %v633
        %v648 = vunpack.c.l.b16 %v634
        %v649 = vpack.c.b16 %v646, %v645
        %v650 = vpack.c.b16 %v648, %v647
        %vm653 = vcmask 261120
        %v655 = vsel %vm653, %v630, 0
        %657 = vmatprep.subr.bf16.mxu0 0
        %658 = vmatpush1.bf16.msra.mxu0 %v649
        %659 = vmatprep.subr.bf16.mxu0 0
        %660 = vmatpush1.bf16.msra.mxu0 %v650
        %661 = vmatprep.subr.bf16.mxu0 0
        %662 = vmatpush1.bf16.msra.mxu0 0
        %663 = vmatprep.subr.bf16.mxu0 0
        %664 = vmatpush1.bf16.msra.mxu0 0
        %665 = vmatprep.subr.bf16.mxu0 0
        %666 = vmatpush1.bf16.msra.mxu0 0
        %667 = vmatprep.subr.bf16.mxu0 0
        %668 = vmatpush1.bf16.msra.mxu0 0
        %669 = vmatprep.subr.bf16.mxu0 0
        %670 = vmatpush1.bf16.msra.mxu0 0
        %671 = vmatprep.subr.bf16.mxu0 0
        %672 = vmatpush1.bf16.msra.mxu0 0
        %673 = vmatprep.subr.bf16.mxu0 0
        %674 = vmatpush1.bf16.msra.mxu0 0
        %675 = vmatprep.subr.bf16.mxu0 0
        %676 = vmatpush1.bf16.msra.mxu0 0
        %677 = vmatprep.subr.bf16.mxu0 0
        %678 = vmatpush1.bf16.msra.mxu0 0
        %679 = vmatprep.subr.bf16.mxu0 0
        %680 = vmatpush1.bf16.msra.mxu0 0
        %681 = vmatprep.subr.bf16.mxu0 0
        %682 = vmatpush1.bf16.msra.mxu0 0
        %683 = vmatprep.subr.bf16.mxu0 0
        %684 = vmatpush1.bf16.msra.mxu0 0
        %685 = vmatprep.subr.bf16.mxu0 0
        %686 = vmatpush1.bf16.msra.mxu0 0
        %687 = vmatprep.subr.bf16.mxu0 0
        %688 = vmatpush1.bf16.msra.mxu0 0
        %689 = vmatprep.mubr.bf16.mxu0 0
        %690 = vmatmul.mubr.bf16.gmra.mrb[0].mxu0 %v655
        %v691 = vpop.f32.mrb[0].mxu0
        %v692 = vadd.f32 %v639, %v691
        %v693 = vpop.f32.mrb[0].mxu0
        %v694 = vpop.f32.mrb[0].mxu0
        %v695 = vpop.f32.mrb[0].mxu0
        %696 = vdwg.mxu0
        %v697 = vpack.c.bf16 %v692, %v692
        %699 = vrot.lane.b32.xlu0 %v697, 96
        %v700 = vpop.permute.xlu0 %699
        %vm701 = vcmask 64512
        %v703 = vsel %vm701, %v697, 0
        %v706 = vsel %vm701, %v700, 0
        %708 = vmatprep.subr.bf16.mxu0 0
        %709 = vmatpush1.bf16.xpose.msra.mxu0 %v706
        %710 = vmatprep.subr.bf16.mxu0 0
        %711 = vmatpush1.bf16.xpose.msra.mxu0 0
        %712 = vmatprep.subr.bf16.mxu0 0
        %713 = vmatpush1.bf16.xpose.msra.mxu0 0
        %714 = vmatprep.subr.bf16.mxu0 0
        %715 = vmatpush1.bf16.xpose.msra.mxu0 0
        %716 = vmatprep.subr.bf16.mxu0 0
        %717 = vmatpush1.bf16.xpose.msra.mxu0 0
        %718 = vmatprep.subr.bf16.mxu0 0
        %719 = vmatpush1.bf16.xpose.msra.mxu0 0
        %720 = vmatprep.subr.bf16.mxu0 0
        %721 = vmatpush1.bf16.xpose.msra.mxu0 0
        %722 = vmatprep.subr.bf16.mxu0 0
        %723 = vmatpush1.bf16.xpose.msra.mxu0 0
        %724 = vmatprep.subr.bf16.mxu0 0
        %725 = vmatpush1.bf16.xpose.msra.mxu0 0
        %726 = vmatprep.subr.bf16.mxu0 0
        %727 = vmatpush1.bf16.xpose.msra.mxu0 0
        %728 = vmatprep.subr.bf16.mxu0 0
        %729 = vmatpush1.bf16.xpose.msra.mxu0 0
        %730 = vmatprep.subr.bf16.mxu0 0
        %731 = vmatpush1.bf16.xpose.msra.mxu0 0
        %732 = vmatprep.subr.bf16.mxu0 0
        %733 = vmatpush1.bf16.xpose.msra.mxu0 0
        %734 = vmatprep.subr.bf16.mxu0 0
        %735 = vmatpush1.bf16.xpose.msra.mxu0 0
        %736 = vmatprep.subr.bf16.mxu0 0
        %737 = vmatpush1.bf16.xpose.msra.mxu0 0
        %738 = vmatprep.subr.bf16.mxu0 0
        %739 = vmatpush1.bf16.xpose.msra.mxu0 0
        %740 = vmatprep.mubr.bf16.mxu0 0
        %741 = vmatmul.mubr.bf16.gmra.mrb[0].mxu0 %v703
        %v742 = vpop.f32.mrb[0].mxu0
        %v743 = vadd.f32 0.0, %v742
        %v744 = vpop.f32.mrb[0].mxu0
        %v745 = vpop.f32.mrb[0].mxu0
        %v746 = vpop.f32.mrb[0].mxu0
        %747 = vdwg.mxu0
        %v748 = vsel %vm701, %v743, -inf
        %749 = vmax.xlane.f32.xlu0 %v748
        %v750 = vpop.xlane.xlu0 %749
        %v751 = vsub.f32 %v743, %v750
        %v752 = vmul.f32 %v751, 1.442695
        %v753 = vpow.pop %v752
        %v754 = vsel %vm701, %v753, 0.0
        %755 = vadd.xlane.f32.xlu0 %v754
        %v756 = vpop.xlane.xlu0 %755
        %v757 = vrcp.pop %v756
        %v758 = vmul.f32 %v753, %v757
        %v759 = vpack.c.bf16 %v758, %v758
        %760 = vrot.lane.b32.xlu0 %v697, 64
        %v761 = vpop.permute.xlu0 %760
        %v763 = vsel %vm701, %v759, 0
        %vm765 = vcmask 1043456
        %v767 = vsel %vm765, %v761, 0
        %769 = vmatprep.subr.bf16.mxu0 0
        %770 = vmatpush1.bf16.msra.mxu0 %v767
        %771 = vmatprep.subr.bf16.mxu0 0
        %772 = vmatpush1.bf16.msra.mxu0 0
        %773 = vmatprep.subr.bf16.mxu0 0
        %774 = vmatpush1.bf16.msra.mxu0 0
        %775 = vmatprep.subr.bf16.mxu0 0
        %776 = vmatpush1.bf16.msra.mxu0 0
        %777 = vmatprep.subr.bf16.mxu0 0
        %778 = vmatpush1.bf16.msra.mxu0 0
        %779 = vmatprep.subr.bf16.mxu0 0
        %780 = vmatpush1.bf16.msra.mxu0 0
        %781 = vmatprep.subr.bf16.mxu0 0
        %782 = vmatpush1.bf16.msra.mxu0 0
        %783 = vmatprep.subr.bf16.mxu0 0
        %784 = vmatpush1.bf16.msra.mxu0 0
        %785 = vmatprep.subr.bf16.mxu0 0
        %786 = vmatpush1.bf16.msra.mxu0 0
        %787 = vmatprep.subr.bf16.mxu0 0
        %788 = vmatpush1.bf16.msra.mxu0 0
        %789 = vmatprep.subr.bf16.mxu0 0
        %790 = vmatpush1.bf16.msra.mxu0 0
        %791 = vmatprep.subr.bf16.mxu0 0
        %792 = vmatpush1.bf16.msra.mxu0 0
        %793 = vmatprep.subr.bf16.mxu0 0
        %794 = vmatpush1.bf16.msra.mxu0 0
        %795 = vmatprep.subr.bf16.mxu0 0
        %796 = vmatpush1.bf16.msra.mxu0 0
        %797 = vmatprep.subr.bf16.mxu0 0
        %798 = vmatpush1.bf16.msra.mxu0 0
        %799 = vmatprep.subr.bf16.mxu0 0
        %800 = vmatpush1.bf16.msra.mxu0 0
        %801 = vmatprep.mubr.bf16.mxu0 0
        %802 = vmatmul.mubr.bf16.gmra.mrb[0].mxu0 %v763
        %v803 = vpop.f32.mrb[0].mxu0
        %v804 = vadd.f32 0.0, %v803
        %v805 = vpop.f32.mrb[0].mxu0
        %v806 = vpop.f32.mrb[0].mxu0
        %v807 = vpop.f32.mrb[0].mxu0
        %808 = vdwg.mxu0
        %809 = vst.msk [vmem:[#allocation2] sm:$0xff] %vm701, %v804
        %810 = vrot.lane.b32.xlu0 %v697, 120
        %v811 = vpop.permute.xlu0 %810
        %812 = vrot.lane.b32.xlu0 %v697, 88
        %v813 = vpop.permute.xlu0 %812
        %v815 = vsel %vm701, %v811, 0
        %v818 = vsel %vm701, %v813, 0
        %820 = vmatprep.subr.bf16.mxu0 0
        %821 = vmatpush1.bf16.xpose.msra.mxu0 %v818
        %822 = vmatprep.subr.bf16.mxu0 0
        %823 = vmatpush1.bf16.xpose.msra.mxu0 0
        %824 = vmatprep.subr.bf16.mxu0 0
        %825 = vmatpush1.bf16.xpose.msra.mxu0 0
        %826 = vmatprep.subr.bf16.mxu0 0
        %827 = vmatpush1.bf16.xpose.msra.mxu0 0
        %828 = vmatprep.subr.bf16.mxu0 0
        %829 = vmatpush1.bf16.xpose.msra.mxu0 0
        %830 = vmatprep.subr.bf16.mxu0 0
        %831 = vmatpush1.bf16.xpose.msra.mxu0 0
        %832 = vmatprep.subr.bf16.mxu0 0
        %833 = vmatpush1.bf16.xpose.msra.mxu0 0
        %834 = vmatprep.subr.bf16.mxu0 0
        %835 = vmatpush1.bf16.xpose.msra.mxu0 0
        %836 = vmatprep.subr.bf16.mxu0 0
        %837 = vmatpush1.bf16.xpose.msra.mxu0 0
        %838 = vmatprep.subr.bf16.mxu0 0
        %839 = vmatpush1.bf16.xpose.msra.mxu0 0
        %840 = vmatprep.subr.bf16.mxu0 0
        %841 = vmatpush1.bf16.xpose.msra.mxu0 0
        %842 = vmatprep.subr.bf16.mxu0 0
        %843 = vmatpush1.bf16.xpose.msra.mxu0 0
        %844 = vmatprep.subr.bf16.mxu0 0
        %845 = vmatpush1.bf16.xpose.msra.mxu0 0
        %846 = vmatprep.subr.bf16.mxu0 0
        %847 = vmatpush1.bf16.xpose.msra.mxu0 0
        %848 = vmatprep.subr.bf16.mxu0 0
        %849 = vmatpush1.bf16.xpose.msra.mxu0 0
        %850 = vmatprep.subr.bf16.mxu0 0
        %851 = vmatpush1.bf16.xpose.msra.mxu0 0
        %852 = vmatprep.mubr.bf16.mxu0 0
        %853 = vmatmul.mubr.bf16.gmra.mrb[0].mxu0 %v815
        %v854 = vpop.f32.mrb[0].mxu0
        %v855 = vadd.f32 0.0, %v854
        %v856 = vpop.f32.mrb[0].mxu0
        %v857 = vpop.f32.mrb[0].mxu0
        %v858 = vpop.f32.mrb[0].mxu0
        %859 = vdwg.mxu0
        %v860 = vsel %vm701, %v855, -inf
        %861 = vmax.xlane.f32.xlu0 %v860
        %v862 = vpop.xlane.xlu0 %861
        %v863 = vsub.f32 %v855, %v862
        %v864 = vmul.f32 %v863, 1.442695
        %v865 = vpow.pop %v864
        %v866 = vsel %vm701, %v865, 0.0
        %867 = vadd.xlane.f32.xlu0 %v866
        %v868 = vpop.xlane.xlu0 %867
        %v869 = vrcp.pop %v868
        %v870 = vmul.f32 %v865, %v869
        %v871 = vpack.c.bf16 %v870, %v870
        %872 = vrot.lane.b32.xlu0 %v697, 56
        %v873 = vpop.permute.xlu0 %872
        %v875 = vsel %vm701, %v871, 0
        %v878 = vsel %vm765, %v873, 0
        %880 = vmatprep.subr.bf16.mxu0 0
        %881 = vmatpush1.bf16.msra.mxu0 %v878
        %882 = vmatprep.subr.bf16.mxu0 0
        %883 = vmatpush1.bf16.msra.mxu0 0
        %884 = vmatprep.subr.bf16.mxu0 0
        %885 = vmatpush1.bf16.msra.mxu0 0
        %886 = vmatprep.subr.bf16.mxu0 0
        %887 = vmatpush1.bf16.msra.mxu0 0
        %888 = vmatprep.subr.bf16.mxu0 0
        %889 = vmatpush1.bf16.msra.mxu0 0
        %890 = vmatprep.subr.bf16.mxu0 0
        %891 = vmatpush1.bf16.msra.mxu0 0
        %892 = vmatprep.subr.bf16.mxu0 0
        %893 = vmatpush1.bf16.msra.mxu0 0
        %894 = vmatprep.subr.bf16.mxu0 0
        %895 = vmatpush1.bf16.msra.mxu0 0
        %896 = vmatprep.subr.bf16.mxu0 0
        %897 = vmatpush1.bf16.msra.mxu0 0
        %898 = vmatprep.subr.bf16.mxu0 0
        %899 = vmatpush1.bf16.msra.mxu0 0
        %900 = vmatprep.subr.bf16.mxu0 0
        %901 = vmatpush1.bf16.msra.mxu0 0
        %902 = vmatprep.subr.bf16.mxu0 0
        %903 = vmatpush1.bf16.msra.mxu0 0
        %904 = vmatprep.subr.bf16.mxu0 0
        %905 = vmatpush1.bf16.msra.mxu0 0
        %906 = vmatprep.subr.bf16.mxu0 0
        %907 = vmatpush1.bf16.msra.mxu0 0
        %908 = vmatprep.subr.bf16.mxu0 0
        %909 = vmatpush1.bf16.msra.mxu0 0
        %910 = vmatprep.subr.bf16.mxu0 0
        %911 = vmatpush1.bf16.msra.mxu0 0
        %912 = vmatprep.mubr.bf16.mxu0 0
        %913 = vmatmul.mubr.bf16.gmra.mrb[0].mxu0 %v875
        %v914 = vpop.f32.mrb[0].mxu0
        %v915 = vadd.f32 0.0, %v914
        %v916 = vpop.f32.mrb[0].mxu0
        %v917 = vpop.f32.mrb[0].mxu0
        %v918 = vpop.f32.mrb[0].mxu0
        %919 = vdwg.mxu0
        %920 = vst.msk [vmem:[#allocation2 + $0x8] sm:$0xff] %vm701, %v915
        %921 = vrot.lane.b32.xlu0 %v697, 112
        %v922 = vpop.permute.xlu0 %921
        %923 = vrot.lane.b32.xlu0 %v697, 80
        %v924 = vpop.permute.xlu0 %923
        %v926 = vsel %vm701, %v922, 0
        %v929 = vsel %vm701, %v924, 0
        %931 = vmatprep.subr.bf16.mxu0 0
        %932 = vmatpush1.bf16.xpose.msra.mxu0 %v929
        %933 = vmatprep.subr.bf16.mxu0 0
        %934 = vmatpush1.bf16.xpose.msra.mxu0 0
        %935 = vmatprep.subr.bf16.mxu0 0
        %936 = vmatpush1.bf16.xpose.msra.mxu0 0
        %937 = vmatprep.subr.bf16.mxu0 0
        %938 = vmatpush1.bf16.xpose.msra.mxu0 0
        %939 = vmatprep.subr.bf16.mxu0 0
        %940 = vmatpush1.bf16.xpose.msra.mxu0 0
        %941 = vmatprep.subr.bf16.mxu0 0
        %942 = vmatpush1.bf16.xpose.msra.mxu0 0
        %943 = vmatprep.subr.bf16.mxu0 0
        %944 = vmatpush1.bf16.xpose.msra.mxu0 0
        %945 = vmatprep.subr.bf16.mxu0 0
        %946 = vmatpush1.bf16.xpose.msra.mxu0 0
        %947 = vmatprep.subr.bf16.mxu0 0
        %948 = vmatpush1.bf16.xpose.msra.mxu0 0
        %949 = vmatprep.subr.bf16.mxu0 0
        %950 = vmatpush1.bf16.xpose.msra.mxu0 0
        %951 = vmatprep.subr.bf16.mxu0 0
        %952 = vmatpush1.bf16.xpose.msra.mxu0 0
        %953 = vmatprep.subr.bf16.mxu0 0
        %954 = vmatpush1.bf16.xpose.msra.mxu0 0
        %955 = vmatprep.subr.bf16.mxu0 0
        %956 = vmatpush1.bf16.xpose.msra.mxu0 0
        %957 = vmatprep.subr.bf16.mxu0 0
        %958 = vmatpush1.bf16.xpose.msra.mxu0 0
        %959 = vmatprep.subr.bf16.mxu0 0
        %960 = vmatpush1.bf16.xpose.msra.mxu0 0
        %961 = vmatprep.subr.bf16.mxu0 0
        %962 = vmatpush1.bf16.xpose.msra.mxu0 0
        %963 = vmatprep.mubr.bf16.mxu0 0
        %964 = vmatmul.mubr.bf16.gmra.mrb[0].mxu0 %v926
        %v965 = vpop.f32.mrb[0].mxu0
        %v966 = vadd.f32 0.0, %v965
        %v967 = vpop.f32.mrb[0].mxu0
        %v968 = vpop.f32.mrb[0].mxu0
        %v969 = vpop.f32.mrb[0].mxu0
        %970 = vdwg.mxu0
        %v971 = vsel %vm701, %v966, -inf
        %972 = vmax.xlane.f32.xlu0 %v971
        %v973 = vpop.xlane.xlu0 %972
        %v974 = vsub.f32 %v966, %v973
        %v975 = vmul.f32 %v974, 1.442695
        %v976 = vpow.pop %v975
        %v977 = vsel %vm701, %v976, 0.0
        %978 = vadd.xlane.f32.xlu0 %v977
        %v979 = vpop.xlane.xlu0 %978
        %v980 = vrcp.pop %v979
        %v981 = vmul.f32 %v976, %v980
        %v982 = vpack.c.bf16 %v981, %v981
        %983 = vrot.lane.b32.xlu0 %v697, 48
        %v984 = vpop.permute.xlu0 %983
        %v986 = vsel %vm701, %v982, 0
        %v989 = vsel %vm765, %v984, 0
        %991 = vmatprep.subr.bf16.mxu0 0
        %992 = vmatpush1.bf16.msra.mxu0 %v989
        %993 = vmatprep.subr.bf16.mxu0 0
        %994 = vmatpush1.bf16.msra.mxu0 0
        %995 = vmatprep.subr.bf16.mxu0 0
        %996 = vmatpush1.bf16.msra.mxu0 0
        %997 = vmatprep.subr.bf16.mxu0 0
        %998 = vmatpush1.bf16.msra.mxu0 0
        %999 = vmatprep.subr.bf16.mxu0 0
        %1000 = vmatpush1.bf16.msra.mxu0 0
        %1001 = vmatprep.subr.bf16.mxu0 0
        %1002 = vmatpush1.bf16.msra.mxu0 0
        %1003 = vmatprep.subr.bf16.mxu0 0
        %1004 = vmatpush1.bf16.msra.mxu0 0
        %1005 = vmatprep.subr.bf16.mxu0 0
        %1006 = vmatpush1.bf16.msra.mxu0 0
        %1007 = vmatprep.subr.bf16.mxu0 0
        %1008 = vmatpush1.bf16.msra.mxu0 0
        %1009 = vmatprep.subr.bf16.mxu0 0
        %1010 = vmatpush1.bf16.msra.mxu0 0
        %1011 = vmatprep.subr.bf16.mxu0 0
        %1012 = vmatpush1.bf16.msra.mxu0 0
        %1013 = vmatprep.subr.bf16.mxu0 0
        %1014 = vmatpush1.bf16.msra.mxu0 0
        %1015 = vmatprep.subr.bf16.mxu0 0
        %1016 = vmatpush1.bf16.msra.mxu0 0
        %1017 = vmatprep.subr.bf16.mxu0 0
        %1018 = vmatpush1.bf16.msra.mxu0 0
        %1019 = vmatprep.subr.bf16.mxu0 0
        %1020 = vmatpush1.bf16.msra.mxu0 0
        %1021 = vmatprep.subr.bf16.mxu0 0
        %1022 = vmatpush1.bf16.msra.mxu0 0
        %1023 = vmatprep.mubr.bf16.mxu0 0
        %1024 = vmatmul.mubr.bf16.gmra.mrb[0].mxu0 %v986
        %v1025 = vpop.f32.mrb[0].mxu0
        %v1026 = vadd.f32 0.0, %v1025
        %v1027 = vpop.f32.mrb[0].mxu0
        %v1028 = vpop.f32.mrb[0].mxu0
        %v1029 = vpop.f32.mrb[0].mxu0
        %1030 = vdwg.mxu0
        %1031 = vst.msk [vmem:[#allocation2 + $0x10] sm:$0xff] %vm701, %v1026
        %1032 = vrot.lane.b32.xlu0 %v697, 104
        %v1033 = vpop.permute.xlu0 %1032
        %1034 = vrot.lane.b32.xlu0 %v697, 72
        %v1035 = vpop.permute.xlu0 %1034
        %v1037 = vsel %vm701, %v1033, 0
        %v1040 = vsel %vm701, %v1035, 0
        %1042 = vmatprep.subr.bf16.mxu0 0
        %1043 = vmatpush1.bf16.xpose.msra.mxu0 %v1040
        %1044 = vmatprep.subr.bf16.mxu0 0
        %1045 = vmatpush1.bf16.xpose.msra.mxu0 0
        %1046 = vmatprep.subr.bf16.mxu0 0
        %1047 = vmatpush1.bf16.xpose.msra.mxu0 0
        %1048 = vmatprep.subr.bf16.mxu0 0
        %1049 = vmatpush1.bf16.xpose.msra.mxu0 0
        %1050 = vmatprep.subr.bf16.mxu0 0
        %1051 = vmatpush1.bf16.xpose.msra.mxu0 0
        %1052 = vmatprep.subr.bf16.mxu0 0
        %1053 = vmatpush1.bf16.xpose.msra.mxu0 0
        %1054 = vmatprep.subr.bf16.mxu0 0
        %1055 = vmatpush1.bf16.xpose.msra.mxu0 0
        %1056 = vmatprep.subr.bf16.mxu0 0
        %1057 = vmatpush1.bf16.xpose.msra.mxu0 0
        %1058 = vmatprep.subr.bf16.mxu0 0
        %1059 = vmatpush1.bf16.xpose.msra.mxu0 0
        %1060 = vmatprep.subr.bf16.mxu0 0
        %1061 = vmatpush1.bf16.xpose.msra.mxu0 0
        %1062 = vmatprep.subr.bf16.mxu0 0
        %1063 = vmatpush1.bf16.xpose.msra.mxu0 0
        %1064 = vmatprep.subr.bf16.mxu0 0
        %1065 = vmatpush1.bf16.xpose.msra.mxu0 0
        %1066 = vmatprep.subr.bf16.mxu0 0
        %1067 = vmatpush1.bf16.xpose.msra.mxu0 0
        %1068 = vmatprep.subr.bf16.mxu0 0
        %1069 = vmatpush1.bf16.xpose.msra.mxu0 0
        %1070 = vmatprep.subr.bf16.mxu0 0
        %1071 = vmatpush1.bf16.xpose.msra.mxu0 0
        %1072 = vmatprep.subr.bf16.mxu0 0
        %1073 = vmatpush1.bf16.xpose.msra.mxu0 0
        %1074 = vmatprep.mubr.bf16.mxu0 0
        %1075 = vmatmul.mubr.bf16.gmra.mrb[0].mxu0 %v1037
        %v1076 = vpop.f32.mrb[0].mxu0
        %v1077 = vadd.f32 0.0, %v1076
        %v1078 = vpop.f32.mrb[0].mxu0
        %v1079 = vpop.f32.mrb[0].mxu0
        %v1080 = vpop.f32.mrb[0].mxu0
        %1081 = vdwg.mxu0
        %v1082 = vsel %vm701, %v1077, -inf
        %1083 = vmax.xlane.f32.xlu0 %v1082
        %v1084 = vpop.xlane.xlu0 %1083
        %v1085 = vsub.f32 %v1077, %v1084
        %v1086 = vmul.f32 %v1085, 1.442695
        %v1087 = vpow.pop %v1086
        %v1088 = vsel %vm701, %v1087, 0.0
        %1089 = vadd.xlane.f32.xlu0 %v1088
        %v1090 = vpop.xlane.xlu0 %1089
        %v1091 = vrcp.pop %v1090
        %v1092 = vmul.f32 %v1087, %v1091
        %v1093 = vpack.c.bf16 %v1092, %v1092
        %1094 = vrot.lane.b32.xlu0 %v697, 40
        %v1095 = vpop.permute.xlu0 %1094
        %v1097 = vsel %vm701, %v1093, 0
        %v1100 = vsel %vm765, %v1095, 0
        %1102 = vmatprep.subr.bf16.mxu0 0
        %1103 = vmatpush1.bf16.msra.mxu0 %v1100
        %1104 = vmatprep.subr.bf16.mxu0 0
        %1105 = vmatpush1.bf16.msra.mxu0 0
        %1106 = vmatprep.subr.bf16.mxu0 0
        %1107 = vmatpush1.bf16.msra.mxu0 0
        %1108 = vmatprep.subr.bf16.mxu0 0
        %1109 = vmatpush1.bf16.msra.mxu0 0
        %1110 = vmatprep.subr.bf16.mxu0 0
        %1111 = vmatpush1.bf16.msra.mxu0 0
        %1112 = vmatprep.subr.bf16.mxu0 0
        %1113 = vmatpush1.bf16.msra.mxu0 0
        %1114 = vmatprep.subr.bf16.mxu0 0
        %1115 = vmatpush1.bf16.msra.mxu0 0
        %1116 = vmatprep.subr.bf16.mxu0 0
        %1117 = vmatpush1.bf16.msra.mxu0 0
        %1118 = vmatprep.subr.bf16.mxu0 0
        %1119 = vmatpush1.bf16.msra.mxu0 0
        %1120 = vmatprep.subr.bf16.mxu0 0
        %1121 = vmatpush1.bf16.msra.mxu0 0
        %1122 = vmatprep.subr.bf16.mxu0 0
        %1123 = vmatpush1.bf16.msra.mxu0 0
        %1124 = vmatprep.subr.bf16.mxu0 0
        %1125 = vmatpush1.bf16.msra.mxu0 0
        %1126 = vmatprep.subr.bf16.mxu0 0
        %1127 = vmatpush1.bf16.msra.mxu0 0
        %1128 = vmatprep.subr.bf16.mxu0 0
        %1129 = vmatpush1.bf16.msra.mxu0 0
        %1130 = vmatprep.subr.bf16.mxu0 0
        %1131 = vmatpush1.bf16.msra.mxu0 0
        %1132 = vmatprep.subr.bf16.mxu0 0
        %1133 = vmatpush1.bf16.msra.mxu0 0
        %1134 = vmatprep.mubr.bf16.mxu0 0
        %1135 = vmatmul.mubr.bf16.gmra.mrb[0].mxu0 %v1097
        %v1136 = vpop.f32.mrb[0].mxu0
        %v1137 = vadd.f32 0.0, %v1136
        %v1138 = vpop.f32.mrb[0].mxu0
        %v1139 = vpop.f32.mrb[0].mxu0
        %v1140 = vpop.f32.mrb[0].mxu0
        %1141 = vdwg.mxu0
        %1142 = vst.msk [vmem:[#allocation2 + $0x18] sm:$0xff] %vm701, %v1137
        %v1143 = vld [vmem:[%s13 + $0x1] sm:$0x1]
        %v1144 = vld [vmem:[#allocation2] ss:$4 sm:$0xff]
        %s1145 = scalar_lea.vmem [#allocation2], 1
        %v1146 = vld [vmem:[%s1145] ss:$4 sm:$0xff]
        %s1147 = scalar_lea.vmem [#allocation2], 2
        %v1148 = vld [vmem:[%s1147] ss:$4 sm:$0xff]
        %s1149 = scalar_lea.vmem [#allocation2], 3
        %v1150 = vld [vmem:[%s1149] ss:$4 sm:$0xff]
        %1152 = vrot.lane.b32.xlu0 %v1146, 8
        %v1153 = vpop.permute.xlu0 %1152
        %1156 = vrot.lane.b32.xlu0 %v1148, 16
        %v1157 = vpop.permute.xlu0 %1156
        %1160 = vrot.lane.b32.xlu0 %v1150, 24
        %v1161 = vpop.permute.xlu0 %1160
        %v1163 = vsel %vm701, %v1144, %v1153
        %v1164 = vsel %vm585, %v1163, %v1157
        %vm1165 = vcmask 195584
        %v1166 = vsel %vm1165, %v1164, %v1161
        %v1167 = vpack.c.bf16 %v1166, %v1166
        %v1168 = vld [vmem:[#allocation6] sm:$0xf]
        %v1169 = vld [vmem:[#allocation6 + $0x4] sm:$0xf]
        %v1170 = vld [vmem:[#allocation6 + $0x8] sm:$0xf]
        %v1171 = vld [vmem:[#allocation6 + $0xc] sm:$0xf]
        %v1172 = vlaneseq
        %v1173 = vshrl.u32 %v1172, 7
        %v1174 = vsub.s32 0, %v1173
        %v1175 = vrot.slane %v1143, %v1174
        %v1180 = vunpack.c.l.b16 %v1168
        %v1181 = vunpack.c.l.b16 %v1169
        %v1182 = vunpack.c.l.b16 %v1170
        %v1183 = vunpack.c.l.b16 %v1171
        %v1184 = vpack.c.b16 %v1181, %v1180
        %v1185 = vpack.c.b16 %v1183, %v1182
        %v1189 = vsel %vm653, %v1167, 0
        %1191 = vmatprep.subr.bf16.mxu0 0
        %1192 = vmatpush1.bf16.msra.mxu0 %v1184
        %1193 = vmatprep.subr.bf16.mxu0 0
        %1194 = vmatpush1.bf16.msra.mxu0 %v1185
        %1195 = vmatprep.subr.bf16.mxu0 0
        %1196 = vmatpush1.bf16.msra.mxu0 0
        %1197 = vmatprep.subr.bf16.mxu0 0
        %1198 = vmatpush1.bf16.msra.mxu0 0
        %1199 = vmatprep.subr.bf16.mxu0 0
        %1200 = vmatpush1.bf16.msra.mxu0 0
        %1201 = vmatprep.subr.bf16.mxu0 0
        %1202 = vmatpush1.bf16.msra.mxu0 0
        %1203 = vmatprep.subr.bf16.mxu0 0
        %1204 = vmatpush1.bf16.msra.mxu0 0
        %1205 = vmatprep.subr.bf16.mxu0 0
        %1206 = vmatpush1.bf16.msra.mxu0 0
        %1207 = vmatprep.subr.bf16.mxu0 0
        %1208 = vmatpush1.bf16.msra.mxu0 0
        %1209 = vmatprep.subr.bf16.mxu0 0
        %1210 = vmatpush1.bf16.msra.mxu0 0
        %1211 = vmatprep.subr.bf16.mxu0 0
        %1212 = vmatpush1.bf16.msra.mxu0 0
        %1213 = vmatprep.subr.bf16.mxu0 0
        %1214 = vmatpush1.bf16.msra.mxu0 0
        %1215 = vmatprep.subr.bf16.mxu0 0
        %1216 = vmatpush1.bf16.msra.mxu0 0
        %1217 = vmatprep.subr.bf16.mxu0 0
        %1218 = vmatpush1.bf16.msra.mxu0 0
        %1219 = vmatprep.subr.bf16.mxu0 0
        %1220 = vmatpush1.bf16.msra.mxu0 0
        %1221 = vmatprep.subr.bf16.mxu0 0
        %1222 = vmatpush1.bf16.msra.mxu0 0
        %1223 = vmatprep.mubr.bf16.mxu0 0
        %1224 = vmatmul.mubr.bf16.gmra.mrb[0].mxu0 %v1189
        %v1225 = vpop.f32.mrb[0].mxu0
        %v1226 = vadd.f32 %v1175, %v1225
        %v1227 = vpop.f32.mrb[0].mxu0
        %v1228 = vpop.f32.mrb[0].mxu0
        %v1229 = vpop.f32.mrb[0].mxu0
        %1230 = vdwg.mxu0
        %v1231 = vadd.f32 %v1226, %v624
        %v1232 = vsel %vm653, %v1231, 0.0
        %1233 = vadd.xlane.f32.xlu0 %v1232
        %v1234 = vpop.xlane.xlu0 %1233
        %v1235 = vrcp.pop 32.0
        %v1236 = vmul.f32 %v1234, %v1235
        %v1237 = vsub.f32 %v1231, %v1236
        %v1238 = vmul.f32 %v1237, %v1237
        %v1239 = vsel %vm653, %v1238, 0.0
        %1240 = vadd.xlane.f32.xlu0 %v1239
        %v1241 = vpop.xlane.xlu0 %1240
        %v1242 = vmul.f32 %v1241, %v1235
        %v1243 = vld [vmem:[%s13 + $0x2] sm:$0x1]
        %v1244 = vadd.f32 %v1242, 1e-05
        %v1245 = vrsqrt.pop %v1244
        %v1246 = vmul.f32 %v1237, %v1245
        %v1247 = vlaneseq
        %v1248 = vshrl.u32 %v1247, 7
        %v1249 = vsub.s32 0, %v1248
        %v1250 = vrot.slane %v1243, %v1249
        %v1251 = vmul.f32 %v1250, %v1246
        %v1252 = vld [vmem:[%s13 + $0x3] sm:$0x1]
        %v1253 = vlaneseq
        %v1254 = vshrl.u32 %v1253, 7
        %v1255 = vsub.s32 0, %v1254
        %v1256 = vrot.slane %v1252, %v1255
        %v1257 = vadd.f32 %v1251, %v1256
        %v1258 = vld [vmem:[%s11] sm:$0x1]
        %v1259 = vpack.c.bf16 %v569, %v569
        %v1260 = vld [vmem:[#allocation8] sm:$0xf]
        %v1261 = vld [vmem:[#allocation8 + $0x4] sm:$0xf]
        %v1262 = vld [vmem:[#allocation8 + $0x8] sm:$0xf]
        %v1263 = vld [vmem:[#allocation8 + $0xc] sm:$0xf]
        %v1265 = vlaneseq
        %v1266 = vshrl.u32 %v1265, 7
        %v1267 = vsub.s32 0, %v1266
        %v1268 = vrot.slane %v1258, %v1267
        %v1274 = vunpack.c.l.b16 %v1260
        %v1275 = vunpack.c.l.b16 %v1261
        %v1276 = vunpack.c.l.b16 %v1262
        %v1277 = vunpack.c.l.b16 %v1263
        %v1278 = vpack.c.b16 %v1275, %v1274
        %v1279 = vpack.c.b16 %v1277, %v1276
        %v1283 = vsel %vm653, %v1259, 0
        %1285 = vmatprep.subr.bf16.mxu0 0
        %1286 = vmatpush1.bf16.msra.mxu0 %v1278
        %1287 = vmatprep.subr.bf16.mxu0 0
        %1288 = vmatpush1.bf16.msra.mxu0 %v1279
        %1289 = vmatprep.subr.bf16.mxu0 0
        %1290 = vmatpush1.bf16.msra.mxu0 0
        %1291 = vmatprep.subr.bf16.mxu0 0
        %1292 = vmatpush1.bf16.msra.mxu0 0
        %1293 = vmatprep.subr.bf16.mxu0 0
        %1294 = vmatpush1.bf16.msra.mxu0 0
        %1295 = vmatprep.subr.bf16.mxu0 0
        %1296 = vmatpush1.bf16.msra.mxu0 0
        %1297 = vmatprep.subr.bf16.mxu0 0
        %1298 = vmatpush1.bf16.msra.mxu0 0
        %1299 = vmatprep.subr.bf16.mxu0 0
        %1300 = vmatpush1.bf16.msra.mxu0 0
        %1301 = vmatprep.subr.bf16.mxu0 0
        %1302 = vmatpush1.bf16.msra.mxu0 0
        %1303 = vmatprep.subr.bf16.mxu0 0
        %1304 = vmatpush1.bf16.msra.mxu0 0
        %1305 = vmatprep.subr.bf16.mxu0 0
        %1306 = vmatpush1.bf16.msra.mxu0 0
        %1307 = vmatprep.subr.bf16.mxu0 0
        %1308 = vmatpush1.bf16.msra.mxu0 0
        %1309 = vmatprep.subr.bf16.mxu0 0
        %1310 = vmatpush1.bf16.msra.mxu0 0
        %1311 = vmatprep.subr.bf16.mxu0 0
        %1312 = vmatpush1.bf16.msra.mxu0 0
        %1313 = vmatprep.subr.bf16.mxu0 0
        %1314 = vmatpush1.bf16.msra.mxu0 0
        %1315 = vmatprep.subr.bf16.mxu0 0
        %1316 = vmatpush1.bf16.msra.mxu0 0
        %1317 = vmatprep.mubr.bf16.mxu0 0
        %1318 = vmatmul.mubr.bf16.gmra.mrb[0].mxu0 %v1283
        %v1319 = vpop.f32.mrb[0].mxu0
        %v1320 = vadd.f32 %v1268, %v1319
        %v1321 = vpop.f32.mrb[0].mxu0
        %v1322 = vpop.f32.mrb[0].mxu0
        %v1323 = vpop.f32.mrb[0].mxu0
        %1324 = vdwg.mxu0
        %v1325 = vld [vmem:[%s13 + $0x4] sm:$0x1]
        %v1326 = vpack.c.bf16 %v1257, %v1257
        %v1327 = vld [vmem:[#allocation9] sm:$0xf]
        %v1328 = vld [vmem:[#allocation9 + $0x4] sm:$0xf]
        %v1329 = vld [vmem:[#allocation9 + $0x8] sm:$0xf]
        %v1330 = vld [vmem:[#allocation9 + $0xc] sm:$0xf]
        %v1331 = vlaneseq
        %v1332 = vshrl.u32 %v1331, 7
        %v1333 = vsub.s32 0, %v1332
        %v1334 = vrot.slane %v1325, %v1333
        %v1339 = vunpack.c.l.b16 %v1327
        %v1340 = vunpack.c.l.b16 %v1328
        %v1341 = vunpack.c.l.b16 %v1329
        %v1342 = vunpack.c.l.b16 %v1330
        %v1343 = vpack.c.b16 %v1340, %v1339
        %v1344 = vpack.c.b16 %v1342, %v1341
        %v1348 = vsel %vm653, %v1326, 0
        %1350 = vmatprep.subr.bf16.mxu0 0
        %1351 = vmatpush1.bf16.msra.mxu0 %v1343
        %1352 = vmatprep.subr.bf16.mxu0 0
        %1353 = vmatpush1.bf16.msra.mxu0 %v1344
        %1354 = vmatprep.subr.bf16.mxu0 0
        %1355 = vmatpush1.bf16.msra.mxu0 0
        %1356 = vmatprep.subr.bf16.mxu0 0
        %1357 = vmatpush1.bf16.msra.mxu0 0
        %1358 = vmatprep.subr.bf16.mxu0 0
        %1359 = vmatpush1.bf16.msra.mxu0 0
        %1360 = vmatprep.subr.bf16.mxu0 0
        %1361 = vmatpush1.bf16.msra.mxu0 0
        %1362 = vmatprep.subr.bf16.mxu0 0
        %1363 = vmatpush1.bf16.msra.mxu0 0
        %1364 = vmatprep.subr.bf16.mxu0 0
        %1365 = vmatpush1.bf16.msra.mxu0 0
        %1366 = vmatprep.subr.bf16.mxu0 0
        %1367 = vmatpush1.bf16.msra.mxu0 0
        %1368 = vmatprep.subr.bf16.mxu0 0
        %1369 = vmatpush1.bf16.msra.mxu0 0
        %1370 = vmatprep.subr.bf16.mxu0 0
        %1371 = vmatpush1.bf16.msra.mxu0 0
        %1372 = vmatprep.subr.bf16.mxu0 0
        %1373 = vmatpush1.bf16.msra.mxu0 0
        %1374 = vmatprep.subr.bf16.mxu0 0
        %1375 = vmatpush1.bf16.msra.mxu0 0
        %1376 = vmatprep.subr.bf16.mxu0 0
        %1377 = vmatpush1.bf16.msra.mxu0 0
        %1378 = vmatprep.subr.bf16.mxu0 0
        %1379 = vmatpush1.bf16.msra.mxu0 0
        %1380 = vmatprep.subr.bf16.mxu0 0
        %1381 = vmatpush1.bf16.msra.mxu0 0
        %1382 = vmatprep.mubr.bf16.mxu0 0
        %1383 = vmatmul.mubr.bf16.gmra.mrb[0].mxu0 %v1348
        %v1384 = vpop.f32.mrb[0].mxu0
        %v1385 = vadd.f32 %v1334, %v1384
        %v1386 = vpop.f32.mrb[0].mxu0
        %v1387 = vpop.f32.mrb[0].mxu0
        %v1388 = vpop.f32.mrb[0].mxu0
        %1389 = vdwg.mxu0
        %v1390 = vpack.c.bf16 %v1385, %v1385
        %v1391 = vpack.c.bf16 %v1320, %v1320
        %v1393 = vsel %vm701, %v1390, 0
        %v1396 = vsel %vm701, %v1391, 0
        %1398 = vmatprep.subr.bf16.mxu0 0
        %1399 = vmatpush1.bf16.xpose.msra.mxu0 %v1396
        %1400 = vmatprep.subr.bf16.mxu0 0
        %1401 = vmatpush1.bf16.xpose.msra.mxu0 0
        %1402 = vmatprep.subr.bf16.mxu0 0
        %1403 = vmatpush1.bf16.xpose.msra.mxu0 0
        %1404 = vmatprep.subr.bf16.mxu0 0
        %1405 = vmatpush1.bf16.xpose.msra.mxu0 0
        %1406 = vmatprep.subr.bf16.mxu0 0
        %1407 = vmatpush1.bf16.xpose.msra.mxu0 0
        %1408 = vmatprep.subr.bf16.mxu0 0
        %1409 = vmatpush1.bf16.xpose.msra.mxu0 0
        %1410 = vmatprep.subr.bf16.mxu0 0
        %1411 = vmatpush1.bf16.xpose.msra.mxu0 0
        %1412 = vmatprep.subr.bf16.mxu0 0
        %1413 = vmatpush1.bf16.xpose.msra.mxu0 0
        %1414 = vmatprep.subr.bf16.mxu0 0
        %1415 = vmatpush1.bf16.xpose.msra.mxu0 0
        %1416 = vmatprep.subr.bf16.mxu0 0
        %1417 = vmatpush1.bf16.xpose.msra.mxu0 0
        %1418 = vmatprep.subr.bf16.mxu0 0
        %1419 = vmatpush1.bf16.xpose.msra.mxu0 0
        %1420 = vmatprep.subr.bf16.mxu0 0
        %1421 = vmatpush1.bf16.xpose.msra.mxu0 0
        %1422 = vmatprep.subr.bf16.mxu0 0
        %1423 = vmatpush1.bf16.xpose.msra.mxu0 0
        %1424 = vmatprep.subr.bf16.mxu0 0
        %1425 = vmatpush1.bf16.xpose.msra.mxu0 0
        %1426 = vmatprep.subr.bf16.mxu0 0
        %1427 = vmatpush1.bf16.xpose.msra.mxu0 0
        %1428 = vmatprep.subr.bf16.mxu0 0
        %1429 = vmatpush1.bf16.xpose.msra.mxu0 0
        %1430 = vmatprep.mubr.bf16.mxu0 0
        %1431 = vmatmul.mubr.bf16.gmra.mrb[0].mxu0 %v1393
        %v1432 = vpop.f32.mrb[0].mxu0
        %v1433 = vadd.f32 0.0, %v1432
        %v1434 = vpop.f32.mrb[0].mxu0
        %v1435 = vpop.f32.mrb[0].mxu0
        %v1436 = vpop.f32.mrb[0].mxu0
        %1437 = vdwg.mxu0
        %v1438 = vsel %vm701, %v1433, -inf
        %1439 = vmax.xlane.f32.xlu0 %v1438
        %v1440 = vpop.xlane.xlu0 %1439
        %v1441 = vsub.f32 %v1433, %v1440
        %v1442 = vmul.f32 %v1441, 1.442695
        %v1443 = vpow.pop %v1442
        %v1444 = vsel %vm701, %v1443, 0.0
        %1445 = vadd.xlane.f32.xlu0 %v1444
        %v1446 = vpop.xlane.xlu0 %1445
        %v1447 = vrcp.pop %v1446
        %v1448 = vmul.f32 %v1443, %v1447
        %v1449 = vpack.c.bf16 %v1448, %v1448
        %1451 = vrot.lane.b32.xlu0 %v1391, 96
        %v1452 = vpop.permute.xlu0 %1451
        %v1454 = vsel %vm701, %v1449, 0
        %v1457 = vsel %vm765, %v1452, 0
        %1459 = vmatprep.subr.bf16.mxu0 0
        %1460 = vmatpush1.bf16.msra.mxu0 %v1457
        %1461 = vmatprep.subr.bf16.mxu0 0
        %1462 = vmatpush1.bf16.msra.mxu0 0
        %1463 = vmatprep.subr.bf16.mxu0 0
        %1464 = vmatpush1.bf16.msra.mxu0 0
        %1465 = vmatprep.subr.bf16.mxu0 0
        %1466 = vmatpush1.bf16.msra.mxu0 0
        %1467 = vmatprep.subr.bf16.mxu0 0
        %1468 = vmatpush1.bf16.msra.mxu0 0
        %1469 = vmatprep.subr.bf16.mxu0 0
        %1470 = vmatpush1.bf16.msra.mxu0 0
        %1471 = vmatprep.subr.bf16.mxu0 0
        %1472 = vmatpush1.bf16.msra.mxu0 0
        %1473 = vmatprep.subr.bf16.mxu0 0
        %1474 = vmatpush1.bf16.msra.mxu0 0
        %1475 = vmatprep.subr.bf16.mxu0 0
        %1476 = vmatpush1.bf16.msra.mxu0 0
        %1477 = vmatprep.subr.bf16.mxu0 0
        %1478 = vmatpush1.bf16.msra.mxu0 0
        %1479 = vmatprep.subr.bf16.mxu0 0
        %1480 = vmatpush1.bf16.msra.mxu0 0
        %1481 = vmatprep.subr.bf16.mxu0 0
        %1482 = vmatpush1.bf16.msra.mxu0 0
        %1483 = vmatprep.subr.bf16.mxu0 0
        %1484 = vmatpush1.bf16.msra.mxu0 0
        %1485 = vmatprep.subr.bf16.mxu0 0
        %1486 = vmatpush1.bf16.msra.mxu0 0
        %1487 = vmatprep.subr.bf16.mxu0 0
        %1488 = vmatpush1.bf16.msra.mxu0 0
        %1489 = vmatprep.subr.bf16.mxu0 0
        %1490 = vmatpush1.bf16.msra.mxu0 0
        %1491 = vmatprep.mubr.bf16.mxu0 0
        %1492 = vmatmul.mubr.bf16.gmra.mrb[0].mxu0 %v1454
        %v1493 = vpop.f32.mrb[0].mxu0
        %v1494 = vadd.f32 0.0, %v1493
        %v1495 = vpop.f32.mrb[0].mxu0
        %v1496 = vpop.f32.mrb[0].mxu0
        %v1497 = vpop.f32.mrb[0].mxu0
        %1498 = vdwg.mxu0
        %1499 = vst.msk [vmem:[#allocation2] sm:$0xff] %vm701, %v1494
        %1501 = vrot.lane.b32.xlu0 %v1390, 120
        %v1502 = vpop.permute.xlu0 %1501
        %1503 = vrot.lane.b32.xlu0 %v1391, 120
        %v1504 = vpop.permute.xlu0 %1503
        %v1506 = vsel %vm701, %v1502, 0
        %v1509 = vsel %vm701, %v1504, 0
        %1511 = vmatprep.subr.bf16.mxu0 0
        %1512 = vmatpush1.bf16.xpose.msra.mxu0 %v1509
        %1513 = vmatprep.subr.bf16.mxu0 0
        %1514 = vmatpush1.bf16.xpose.msra.mxu0 0
        %1515 = vmatprep.subr.bf16.mxu0 0
        %1516 = vmatpush1.bf16.xpose.msra.mxu0 0
        %1517 = vmatprep.subr.bf16.mxu0 0
        %1518 = vmatpush1.bf16.xpose.msra.mxu0 0
        %1519 = vmatprep.subr.bf16.mxu0 0
        %1520 = vmatpush1.bf16.xpose.msra.mxu0 0
        %1521 = vmatprep.subr.bf16.mxu0 0
        %1522 = vmatpush1.bf16.xpose.msra.mxu0 0
        %1523 = vmatprep.subr.bf16.mxu0 0
        %1524 = vmatpush1.bf16.xpose.msra.mxu0 0
        %1525 = vmatprep.subr.bf16.mxu0 0
        %1526 = vmatpush1.bf16.xpose.msra.mxu0 0
        %1527 = vmatprep.subr.bf16.mxu0 0
        %1528 = vmatpush1.bf16.xpose.msra.mxu0 0
        %1529 = vmatprep.subr.bf16.mxu0 0
        %1530 = vmatpush1.bf16.xpose.msra.mxu0 0
        %1531 = vmatprep.subr.bf16.mxu0 0
        %1532 = vmatpush1.bf16.xpose.msra.mxu0 0
        %1533 = vmatprep.subr.bf16.mxu0 0
        %1534 = vmatpush1.bf16.xpose.msra.mxu0 0
        %1535 = vmatprep.subr.bf16.mxu0 0
        %1536 = vmatpush1.bf16.xpose.msra.mxu0 0
        %1537 = vmatprep.subr.bf16.mxu0 0
        %1538 = vmatpush1.bf16.xpose.msra.mxu0 0
        %1539 = vmatprep.subr.bf16.mxu0 0
        %1540 = vmatpush1.bf16.xpose.msra.mxu0 0
        %1541 = vmatprep.subr.bf16.mxu0 0
        %1542 = vmatpush1.bf16.xpose.msra.mxu0 0
        %1543 = vmatprep.mubr.bf16.mxu0 0
        %1544 = vmatmul.mubr.bf16.gmra.mrb[0].mxu0 %v1506
        %v1545 = vpop.f32.mrb[0].mxu0
        %v1546 = vadd.f32 0.0, %v1545
        %v1547 = vpop.f32.mrb[0].mxu0
        %v1548 = vpop.f32.mrb[0].mxu0
        %v1549 = vpop.f32.mrb[0].mxu0
        %1550 = vdwg.mxu0
        %v1551 = vsel %vm701, %v1546, -inf
        %1552 = vmax.xlane.f32.xlu0 %v1551
        %v1553 = vpop.xlane.xlu0 %1552
        %v1554 = vsub.f32 %v1546, %v1553
        %v1555 = vmul.f32 %v1554, 1.442695
        %v1556 = vpow.pop %v1555
        %v1557 = vsel %vm701, %v1556, 0.0
        %1558 = vadd.xlane.f32.xlu0 %v1557
        %v1559 = vpop.xlane.xlu0 %1558
        %v1560 = vrcp.pop %v1559
        %v1561 = vmul.f32 %v1556, %v1560
        %v1562 = vpack.c.bf16 %v1561, %v1561
        %1563 = vrot.lane.b32.xlu0 %v1391, 88
        %v1564 = vpop.permute.xlu0 %1563
        %v1566 = vsel %vm701, %v1562, 0
        %v1569 = vsel %vm765, %v1564, 0
        %1571 = vmatprep.subr.bf16.mxu0 0
        %1572 = vmatpush1.bf16.msra.mxu0 %v1569
        %1573 = vmatprep.subr.bf16.mxu0 0
        %1574 = vmatpush1.bf16.msra.mxu0 0
        %1575 = vmatprep.subr.bf16.mxu0 0
        %1576 = vmatpush1.bf16.msra.mxu0 0
        %1577 = vmatprep.subr.bf16.mxu0 0
        %1578 = vmatpush1.bf16.msra.mxu0 0
        %1579 = vmatprep.subr.bf16.mxu0 0
        %1580 = vmatpush1.bf16.msra.mxu0 0
        %1581 = vmatprep.subr.bf16.mxu0 0
        %1582 = vmatpush1.bf16.msra.mxu0 0
        %1583 = vmatprep.subr.bf16.mxu0 0
        %1584 = vmatpush1.bf16.msra.mxu0 0
        %1585 = vmatprep.subr.bf16.mxu0 0
        %1586 = vmatpush1.bf16.msra.mxu0 0
        %1587 = vmatprep.subr.bf16.mxu0 0
        %1588 = vmatpush1.bf16.msra.mxu0 0
        %1589 = vmatprep.subr.bf16.mxu0 0
        %1590 = vmatpush1.bf16.msra.mxu0 0
        %1591 = vmatprep.subr.bf16.mxu0 0
        %1592 = vmatpush1.bf16.msra.mxu0 0
        %1593 = vmatprep.subr.bf16.mxu0 0
        %1594 = vmatpush1.bf16.msra.mxu0 0
        %1595 = vmatprep.subr.bf16.mxu0 0
        %1596 = vmatpush1.bf16.msra.mxu0 0
        %1597 = vmatprep.subr.bf16.mxu0 0
        %1598 = vmatpush1.bf16.msra.mxu0 0
        %1599 = vmatprep.subr.bf16.mxu0 0
        %1600 = vmatpush1.bf16.msra.mxu0 0
        %1601 = vmatprep.subr.bf16.mxu0 0
        %1602 = vmatpush1.bf16.msra.mxu0 0
        %1603 = vmatprep.mubr.bf16.mxu0 0
        %1604 = vmatmul.mubr.bf16.gmra.mrb[0].mxu0 %v1566
        %v1605 = vpop.f32.mrb[0].mxu0
        %v1606 = vadd.f32 0.0, %v1605
        %v1607 = vpop.f32.mrb[0].mxu0
        %v1608 = vpop.f32.mrb[0].mxu0
        %v1609 = vpop.f32.mrb[0].mxu0
        %1610 = vdwg.mxu0
        %1611 = vst.msk [vmem:[#allocation2 + $0x8] sm:$0xff] %vm701, %v1606
        %1612 = vrot.lane.b32.xlu0 %v1390, 112
        %v1613 = vpop.permute.xlu0 %1612
        %1614 = vrot.lane.b32.xlu0 %v1391, 112
        %v1615 = vpop.permute.xlu0 %1614
        %v1617 = vsel %vm701, %v1613, 0
        %v1620 = vsel %vm701, %v1615, 0
        %1622 = vmatprep.subr.bf16.mxu0 0
        %1623 = vmatpush1.bf16.xpose.msra.mxu0 %v1620
        %1624 = vmatprep.subr.bf16.mxu0 0
        %1625 = vmatpush1.bf16.xpose.msra.mxu0 0
        %1626 = vmatprep.subr.bf16.mxu0 0
        %1627 = vmatpush1.bf16.xpose.msra.mxu0 0
        %1628 = vmatprep.subr.bf16.mxu0 0
        %1629 = vmatpush1.bf16.xpose.msra.mxu0 0
        %1630 = vmatprep.subr.bf16.mxu0 0
        %1631 = vmatpush1.bf16.xpose.msra.mxu0 0
        %1632 = vmatprep.subr.bf16.mxu0 0
        %1633 = vmatpush1.bf16.xpose.msra.mxu0 0
        %1634 = vmatprep.subr.bf16.mxu0 0
        %1635 = vmatpush1.bf16.xpose.msra.mxu0 0
        %1636 = vmatprep.subr.bf16.mxu0 0
        %1637 = vmatpush1.bf16.xpose.msra.mxu0 0
        %1638 = vmatprep.subr.bf16.mxu0 0
        %1639 = vmatpush1.bf16.xpose.msra.mxu0 0
        %1640 = vmatprep.subr.bf16.mxu0 0
        %1641 = vmatpush1.bf16.xpose.msra.mxu0 0
        %1642 = vmatprep.subr.bf16.mxu0 0
        %1643 = vmatpush1.bf16.xpose.msra.mxu0 0
        %1644 = vmatprep.subr.bf16.mxu0 0
        %1645 = vmatpush1.bf16.xpose.msra.mxu0 0
        %1646 = vmatprep.subr.bf16.mxu0 0
        %1647 = vmatpush1.bf16.xpose.msra.mxu0 0
        %1648 = vmatprep.subr.bf16.mxu0 0
        %1649 = vmatpush1.bf16.xpose.msra.mxu0 0
        %1650 = vmatprep.subr.bf16.mxu0 0
        %1651 = vmatpush1.bf16.xpose.msra.mxu0 0
        %1652 = vmatprep.subr.bf16.mxu0 0
        %1653 = vmatpush1.bf16.xpose.msra.mxu0 0
        %1654 = vmatprep.mubr.bf16.mxu0 0
        %1655 = vmatmul.mubr.bf16.gmra.mrb[0].mxu0 %v1617
        %v1656 = vpop.f32.mrb[0].mxu0
        %v1657 = vadd.f32 0.0, %v1656
        %v1658 = vpop.f32.mrb[0].mxu0
        %v1659 = vpop.f32.mrb[0].mxu0
        %v1660 = vpop.f32.mrb[0].mxu0
        %1661 = vdwg.mxu0
        %v1662 = vsel %vm701, %v1657, -inf
        %1663 = vmax.xlane.f32.xlu0 %v1662
        %v1664 = vpop.xlane.xlu0 %1663
        %v1665 = vsub.f32 %v1657, %v1664
        %v1666 = vmul.f32 %v1665, 1.442695
        %v1667 = vpow.pop %v1666
        %v1668 = vsel %vm701, %v1667, 0.0
        %1669 = vadd.xlane.f32.xlu0 %v1668
        %v1670 = vpop.xlane.xlu0 %1669
        %v1671 = vrcp.pop %v1670
        %v1672 = vmul.f32 %v1667, %v1671
        %v1673 = vpack.c.bf16 %v1672, %v1672
        %1674 = vrot.lane.b32.xlu0 %v1391, 80
        %v1675 = vpop.permute.xlu0 %1674
        %v1677 = vsel %vm701, %v1673, 0
        %v1680 = vsel %vm765, %v1675, 0
        %1682 = vmatprep.subr.bf16.mxu0 0
        %1683 = vmatpush1.bf16.msra.mxu0 %v1680
        %1684 = vmatprep.subr.bf16.mxu0 0
        %1685 = vmatpush1.bf16.msra.mxu0 0
        %1686 = vmatprep.subr.bf16.mxu0 0
        %1687 = vmatpush1.bf16.msra.mxu0 0
        %1688 = vmatprep.subr.bf16.mxu0 0
        %1689 = vmatpush1.bf16.msra.mxu0 0
        %1690 = vmatprep.subr.bf16.mxu0 0
        %1691 = vmatpush1.bf16.msra.mxu0 0
        %1692 = vmatprep.subr.bf16.mxu0 0
        %1693 = vmatpush1.bf16.msra.mxu0 0
        %1694 = vmatprep.subr.bf16.mxu0 0
        %1695 = vmatpush1.bf16.msra.mxu0 0
        %1696 = vmatprep.subr.bf16.mxu0 0
        %1697 = vmatpush1.bf16.msra.mxu0 0
        %1698 = vmatprep.subr.bf16.mxu0 0
        %1699 = vmatpush1.bf16.msra.mxu0 0
        %1700 = vmatprep.subr.bf16.mxu0 0
        %1701 = vmatpush1.bf16.msra.mxu0 0
        %1702 = vmatprep.subr.bf16.mxu0 0
        %1703 = vmatpush1.bf16.msra.mxu0 0
        %1704 = vmatprep.subr.bf16.mxu0 0
        %1705 = vmatpush1.bf16.msra.mxu0 0
        %1706 = vmatprep.subr.bf16.mxu0 0
        %1707 = vmatpush1.bf16.msra.mxu0 0
        %1708 = vmatprep.subr.bf16.mxu0 0
        %1709 = vmatpush1.bf16.msra.mxu0 0
        %1710 = vmatprep.subr.bf16.mxu0 0
        %1711 = vmatpush1.bf16.msra.mxu0 0
        %1712 = vmatprep.subr.bf16.mxu0 0
        %1713 = vmatpush1.bf16.msra.mxu0 0
        %1714 = vmatprep.mubr.bf16.mxu0 0
        %1715 = vmatmul.mubr.bf16.gmra.mrb[0].mxu0 %v1677
        %v1716 = vpop.f32.mrb[0].mxu0
        %v1717 = vadd.f32 0.0, %v1716
        %v1718 = vpop.f32.mrb[0].mxu0
        %v1719 = vpop.f32.mrb[0].mxu0
        %v1720 = vpop.f32.mrb[0].mxu0
        %1721 = vdwg.mxu0
        %1722 = vst.msk [vmem:[#allocation2 + $0x10] sm:$0xff] %vm701, %v1717
        %1723 = vrot.lane.b32.xlu0 %v1390, 104
        %v1724 = vpop.permute.xlu0 %1723
        %1725 = vrot.lane.b32.xlu0 %v1391, 104
        %v1726 = vpop.permute.xlu0 %1725
        %v1728 = vsel %vm701, %v1724, 0
        %v1731 = vsel %vm701, %v1726, 0
        %1733 = vmatprep.subr.bf16.mxu0 0
        %1734 = vmatpush1.bf16.xpose.msra.mxu0 %v1731
        %1735 = vmatprep.subr.bf16.mxu0 0
        %1736 = vmatpush1.bf16.xpose.msra.mxu0 0
        %1737 = vmatprep.subr.bf16.mxu0 0
        %1738 = vmatpush1.bf16.xpose.msra.mxu0 0
        %1739 = vmatprep.subr.bf16.mxu0 0
        %1740 = vmatpush1.bf16.xpose.msra.mxu0 0
        %1741 = vmatprep.subr.bf16.mxu0 0
        %1742 = vmatpush1.bf16.xpose.msra.mxu0 0
        %1743 = vmatprep.subr.bf16.mxu0 0
        %1744 = vmatpush1.bf16.xpose.msra.mxu0 0
        %1745 = vmatprep.subr.bf16.mxu0 0
        %1746 = vmatpush1.bf16.xpose.msra.mxu0 0
        %1747 = vmatprep.subr.bf16.mxu0 0
        %1748 = vmatpush1.bf16.xpose.msra.mxu0 0
        %1749 = vmatprep.subr.bf16.mxu0 0
        %1750 = vmatpush1.bf16.xpose.msra.mxu0 0
        %1751 = vmatprep.subr.bf16.mxu0 0
        %1752 = vmatpush1.bf16.xpose.msra.mxu0 0
        %1753 = vmatprep.subr.bf16.mxu0 0
        %1754 = vmatpush1.bf16.xpose.msra.mxu0 0
        %1755 = vmatprep.subr.bf16.mxu0 0
        %1756 = vmatpush1.bf16.xpose.msra.mxu0 0
        %1757 = vmatprep.subr.bf16.mxu0 0
        %1758 = vmatpush1.bf16.xpose.msra.mxu0 0
        %1759 = vmatprep.subr.bf16.mxu0 0
        %1760 = vmatpush1.bf16.xpose.msra.mxu0 0
        %1761 = vmatprep.subr.bf16.mxu0 0
        %1762 = vmatpush1.bf16.xpose.msra.mxu0 0
        %1763 = vmatprep.subr.bf16.mxu0 0
        %1764 = vmatpush1.bf16.xpose.msra.mxu0 0
        %1765 = vmatprep.mubr.bf16.mxu0 0
        %1766 = vmatmul.mubr.bf16.gmra.mrb[0].mxu0 %v1728
        %v1767 = vpop.f32.mrb[0].mxu0
        %v1768 = vadd.f32 0.0, %v1767
        %v1769 = vpop.f32.mrb[0].mxu0
        %v1770 = vpop.f32.mrb[0].mxu0
        %v1771 = vpop.f32.mrb[0].mxu0
        %1772 = vdwg.mxu0
        %v1773 = vsel %vm701, %v1768, -inf
        %1774 = vmax.xlane.f32.xlu0 %v1773
        %v1775 = vpop.xlane.xlu0 %1774
        %v1776 = vsub.f32 %v1768, %v1775
        %v1777 = vmul.f32 %v1776, 1.442695
        %v1778 = vpow.pop %v1777
        %v1779 = vsel %vm701, %v1778, 0.0
        %1780 = vadd.xlane.f32.xlu0 %v1779
        %v1781 = vpop.xlane.xlu0 %1780
        %v1782 = vrcp.pop %v1781
        %v1783 = vmul.f32 %v1778, %v1782
        %v1784 = vpack.c.bf16 %v1783, %v1783
        %1785 = vrot.lane.b32.xlu0 %v1391, 72
        %v1786 = vpop.permute.xlu0 %1785
        %v1788 = vsel %vm701, %v1784, 0
        %v1791 = vsel %vm765, %v1786, 0
        %1793 = vmatprep.subr.bf16.mxu0 0
        %1794 = vmatpush1.bf16.msra.mxu0 %v1791
        %1795 = vmatprep.subr.bf16.mxu0 0
        %1796 = vmatpush1.bf16.msra.mxu0 0
        %1797 = vmatprep.subr.bf16.mxu0 0
        %1798 = vmatpush1.bf16.msra.mxu0 0
        %1799 = vmatprep.subr.bf16.mxu0 0
        %1800 = vmatpush1.bf16.msra.mxu0 0
        %1801 = vmatprep.subr.bf16.mxu0 0
        %1802 = vmatpush1.bf16.msra.mxu0 0
        %1803 = vmatprep.subr.bf16.mxu0 0
        %1804 = vmatpush1.bf16.msra.mxu0 0
        %1805 = vmatprep.subr.bf16.mxu0 0
        %1806 = vmatpush1.bf16.msra.mxu0 0
        %1807 = vmatprep.subr.bf16.mxu0 0
        %1808 = vmatpush1.bf16.msra.mxu0 0
        %1809 = vmatprep.subr.bf16.mxu0 0
        %1810 = vmatpush1.bf16.msra.mxu0 0
        %1811 = vmatprep.subr.bf16.mxu0 0
        %1812 = vmatpush1.bf16.msra.mxu0 0
        %1813 = vmatprep.subr.bf16.mxu0 0
        %1814 = vmatpush1.bf16.msra.mxu0 0
        %1815 = vmatprep.subr.bf16.mxu0 0
        %1816 = vmatpush1.bf16.msra.mxu0 0
        %1817 = vmatprep.subr.bf16.mxu0 0
        %1818 = vmatpush1.bf16.msra.mxu0 0
        %1819 = vmatprep.subr.bf16.mxu0 0
        %1820 = vmatpush1.bf16.msra.mxu0 0
        %1821 = vmatprep.subr.bf16.mxu0 0
        %1822 = vmatpush1.bf16.msra.mxu0 0
        %1823 = vmatprep.subr.bf16.mxu0 0
        %1824 = vmatpush1.bf16.msra.mxu0 0
        %1825 = vmatprep.mubr.bf16.mxu0 0
        %1826 = vmatmul.mubr.bf16.gmra.mrb[0].mxu0 %v1788
        %v1827 = vpop.f32.mrb[0].mxu0
        %v1828 = vadd.f32 0.0, %v1827
        %v1829 = vpop.f32.mrb[0].mxu0
        %v1830 = vpop.f32.mrb[0].mxu0
        %v1831 = vpop.f32.mrb[0].mxu0
        %1832 = vdwg.mxu0
        %1833 = vst.msk [vmem:[#allocation2 + $0x18] sm:$0xff] %vm701, %v1828
        %v1834 = vld [vmem:[%s13 + $0x5] sm:$0x1]
        %v1835 = vld [vmem:[#allocation2] ss:$4 sm:$0xff]
        %v1836 = vld [vmem:[%s1145] ss:$4 sm:$0xff]
        %v1837 = vld [vmem:[%s1147] ss:$4 sm:$0xff]
        %v1838 = vld [vmem:[%s1149] ss:$4 sm:$0xff]
        %1840 = vrot.lane.b32.xlu0 %v1836, 8
        %v1841 = vpop.permute.xlu0 %1840
        %1844 = vrot.lane.b32.xlu0 %v1837, 16
        %v1845 = vpop.permute.xlu0 %1844
        %1848 = vrot.lane.b32.xlu0 %v1838, 24
        %v1849 = vpop.permute.xlu0 %1848
        %v1851 = vsel %vm701, %v1835, %v1841
        %v1852 = vsel %vm585, %v1851, %v1845
        %v1853 = vsel %vm1165, %v1852, %v1849
        %v1854 = vpack.c.bf16 %v1853, %v1853
        %v1855 = vld [vmem:[#allocation11] sm:$0xf]
        %v1856 = vld [vmem:[#allocation11 + $0x4] sm:$0xf]
        %v1857 = vld [vmem:[#allocation11 + $0x8] sm:$0xf]
        %v1858 = vld [vmem:[#allocation11 + $0xc] sm:$0xf]
        %v1859 = vlaneseq
        %v1860 = vshrl.u32 %v1859, 7
        %v1861 = vsub.s32 0, %v1860
        %v1862 = vrot.slane %v1834, %v1861
        %v1867 = vunpack.c.l.b16 %v1855
        %v1868 = vunpack.c.l.b16 %v1856
        %v1869 = vunpack.c.l.b16 %v1857
        %v1870 = vunpack.c.l.b16 %v1858
        %v1871 = vpack.c.b16 %v1868, %v1867
        %v1872 = vpack.c.b16 %v1870, %v1869
        %v1876 = vsel %vm653, %v1854, 0
        %1878 = vmatprep.subr.bf16.mxu0 0
        %1879 = vmatpush1.bf16.msra.mxu0 %v1871
        %1880 = vmatprep.subr.bf16.mxu0 0
        %1881 = vmatpush1.bf16.msra.mxu0 %v1872
        %1882 = vmatprep.subr.bf16.mxu0 0
        %1883 = vmatpush1.bf16.msra.mxu0 0
        %1884 = vmatprep.subr.bf16.mxu0 0
        %1885 = vmatpush1.bf16.msra.mxu0 0
        %1886 = vmatprep.subr.bf16.mxu0 0
        %1887 = vmatpush1.bf16.msra.mxu0 0
        %1888 = vmatprep.subr.bf16.mxu0 0
        %1889 = vmatpush1.bf16.msra.mxu0 0
        %1890 = vmatprep.subr.bf16.mxu0 0
        %1891 = vmatpush1.bf16.msra.mxu0 0
        %1892 = vmatprep.subr.bf16.mxu0 0
        %1893 = vmatpush1.bf16.msra.mxu0 0
        %1894 = vmatprep.subr.bf16.mxu0 0
        %1895 = vmatpush1.bf16.msra.mxu0 0
        %1896 = vmatprep.subr.bf16.mxu0 0
        %1897 = vmatpush1.bf16.msra.mxu0 0
        %1898 = vmatprep.subr.bf16.mxu0 0
        %1899 = vmatpush1.bf16.msra.mxu0 0
        %1900 = vmatprep.subr.bf16.mxu0 0
        %1901 = vmatpush1.bf16.msra.mxu0 0
        %1902 = vmatprep.subr.bf16.mxu0 0
        %1903 = vmatpush1.bf16.msra.mxu0 0
        %1904 = vmatprep.subr.bf16.mxu0 0
        %1905 = vmatpush1.bf16.msra.mxu0 0
        %1906 = vmatprep.subr.bf16.mxu0 0
        %1907 = vmatpush1.bf16.msra.mxu0 0
        %1908 = vmatprep.subr.bf16.mxu0 0
        %1909 = vmatpush1.bf16.msra.mxu0 0
        %1910 = vmatprep.mubr.bf16.mxu0 0
        %1911 = vmatmul.mubr.bf16.gmra.mrb[0].mxu0 %v1876
        %v1912 = vpop.f32.mrb[0].mxu0
        %v1913 = vadd.f32 %v1862, %v1912
        %v1914 = vpop.f32.mrb[0].mxu0
        %v1915 = vpop.f32.mrb[0].mxu0
        %v1916 = vpop.f32.mrb[0].mxu0
        %1917 = vdwg.mxu0
        %v1918 = vadd.f32 %v1913, %v1257
        %v1919 = vsel %vm653, %v1918, 0.0
        %1920 = vadd.xlane.f32.xlu0 %v1919
        %v1921 = vpop.xlane.xlu0 %1920
        %v1922 = vmul.f32 %v1921, %v1235
        %v1923 = vsub.f32 %v1918, %v1922
        %v1924 = vmul.f32 %v1923, %v1923
        %v1925 = vsel %vm653, %v1924, 0.0
        %1926 = vadd.xlane.f32.xlu0 %v1925
        %v1927 = vpop.xlane.xlu0 %1926
        %v1928 = vmul.f32 %v1927, %v1235
        %v1929 = vld [vmem:[%s13 + $0x6] sm:$0x1]
        %v1930 = vadd.f32 %v1928, 1e-05
        %v1931 = vrsqrt.pop %v1930
        %v1932 = vmul.f32 %v1923, %v1931
        %v1933 = vlaneseq
        %v1934 = vshrl.u32 %v1933, 7
        %v1935 = vsub.s32 0, %v1934
        %v1936 = vrot.slane %v1929, %v1935
        %v1937 = vmul.f32 %v1936, %v1932
        %v1938 = vld [vmem:[%s13 + $0x7] sm:$0x1]
        %v1939 = vlaneseq
        %v1940 = vshrl.u32 %v1939, 7
        %v1941 = vsub.s32 0, %v1940
        %v1942 = vrot.slane %v1938, %v1941
        %v1943 = vadd.f32 %v1937, %v1942
        %v1944 = vld [vmem:[%s12] sm:$0x1]
        %v1945 = vpack.c.bf16 %v1943, %v1943
        %v1946 = vld [vmem:[#allocation12] sm:$0xf]
        %v1947 = vld [vmem:[#allocation12 + $0x4] sm:$0xf]
        %v1948 = vld [vmem:[#allocation12 + $0x8] sm:$0xf]
        %v1949 = vld [vmem:[#allocation12 + $0xc] sm:$0xf]
        %v1951 = vlaneseq
        %v1952 = vshrl.u32 %v1951, 7
        %v1953 = vsub.s32 0, %v1952
        %v1954 = vrot.slane %v1944, %v1953
        %v1960 = vunpack.c.l.b16 %v1946
        %v1961 = vunpack.c.l.b16 %v1947
        %v1962 = vunpack.c.l.b16 %v1948
        %v1963 = vunpack.c.l.b16 %v1949
        %v1964 = vpack.c.b16 %v1961, %v1960
        %v1965 = vpack.c.b16 %v1963, %v1962
        %v1969 = vsel %vm653, %v1945, 0
        %1971 = vmatprep.subr.bf16.mxu0 0
        %1972 = vmatpush1.bf16.msra.mxu0 %v1964
        %1973 = vmatprep.subr.bf16.mxu0 0
        %1974 = vmatpush1.bf16.msra.mxu0 %v1965
        %1975 = vmatprep.subr.bf16.mxu0 0
        %1976 = vmatpush1.bf16.msra.mxu0 0
        %1977 = vmatprep.subr.bf16.mxu0 0
        %1978 = vmatpush1.bf16.msra.mxu0 0
        %1979 = vmatprep.subr.bf16.mxu0 0
        %1980 = vmatpush1.bf16.msra.mxu0 0
        %1981 = vmatprep.subr.bf16.mxu0 0
        %1982 = vmatpush1.bf16.msra.mxu0 0
        %1983 = vmatprep.subr.bf16.mxu0 0
        %1984 = vmatpush1.bf16.msra.mxu0 0
        %1985 = vmatprep.subr.bf16.mxu0 0
        %1986 = vmatpush1.bf16.msra.mxu0 0
        %1987 = vmatprep.subr.bf16.mxu0 0
        %1988 = vmatpush1.bf16.msra.mxu0 0
        %1989 = vmatprep.subr.bf16.mxu0 0
        %1990 = vmatpush1.bf16.msra.mxu0 0
        %1991 = vmatprep.subr.bf16.mxu0 0
        %1992 = vmatpush1.bf16.msra.mxu0 0
        %1993 = vmatprep.subr.bf16.mxu0 0
        %1994 = vmatpush1.bf16.msra.mxu0 0
        %1995 = vmatprep.subr.bf16.mxu0 0
        %1996 = vmatpush1.bf16.msra.mxu0 0
        %1997 = vmatprep.subr.bf16.mxu0 0
        %1998 = vmatpush1.bf16.msra.mxu0 0
        %1999 = vmatprep.subr.bf16.mxu0 0
        %2000 = vmatpush1.bf16.msra.mxu0 0
        %2001 = vmatprep.subr.bf16.mxu0 0
        %2002 = vmatpush1.bf16.msra.mxu0 0
        %2003 = vmatprep.mubr.bf16.mxu0 0
        %2004 = vmatmul.mubr.bf16.gmra.mrb[0].mxu0 %v1969
        %v2005 = vpop.f32.mrb[0].mxu0
        %v2006 = vadd.f32 %v1954, %v2005
        %v2007 = vpop.f32.mrb[0].mxu0
        %v2008 = vpop.f32.mrb[0].mxu0
        %v2009 = vpop.f32.mrb[0].mxu0
        %2010 = vdwg.mxu0
        %v2011 = vmax.f32 %v2006, 0.0
        %v2012 = vld [vmem:[%s13 + $0x8] sm:$0x1]
        %v2013 = vpack.c.bf16 %v2011, %v2011
        %v2014 = vld [vmem:[%s9] sm:$0xf]
        %v2015 = vld [vmem:[%s9 + $0x4] sm:$0xf]
        %v2016 = vld [vmem:[%s9 + $0x8] sm:$0xf]
        %v2017 = vld [vmem:[%s9 + $0xc] sm:$0xf]
        %v2018 = vld [vmem:[%s9 + $0x10] sm:$0xf]
        %v2019 = vld [vmem:[%s9 + $0x14] sm:$0xf]
        %v2020 = vld [vmem:[%s9 + $0x18] sm:$0xf]
        %v2021 = vld [vmem:[%s9 + $0x1c] sm:$0xf]
        %v2022 = vlaneseq
        %v2023 = vshrl.u32 %v2022, 7
        %v2024 = vsub.s32 0, %v2023
        %v2025 = vrot.slane %v2012, %v2024
        %v2034 = vunpack.c.l.b16 %v2014
        %v2035 = vunpack.c.l.b16 %v2015
        %v2036 = vunpack.c.l.b16 %v2016
        %v2037 = vunpack.c.l.b16 %v2017
        %v2038 = vunpack.c.l.b16 %v2018
        %v2039 = vunpack.c.l.b16 %v2019
        %v2040 = vunpack.c.l.b16 %v2020
        %v2041 = vunpack.c.l.b16 %v2021
        %v2042 = vpack.c.b16 %v2035, %v2034
        %v2043 = vpack.c.b16 %v2037, %v2036
        %v2044 = vpack.c.b16 %v2039, %v2038
        %v2045 = vpack.c.b16 %v2041, %v2040
        %vm2050 = vcmask 523264
        %v2052 = vsel %vm2050, %v2013, 0
        %2054 = vmatprep.subr.bf16.mxu0 0
        %2055 = vmatpush1.bf16.msra.mxu0 %v2042
        %2056 = vmatprep.subr.bf16.mxu0 0
        %2057 = vmatpush1.bf16.msra.mxu0 %v2043
        %2058 = vmatprep.subr.bf16.mxu0 0
        %2059 = vmatpush1.bf16.msra.mxu0 %v2044
        %2060 = vmatprep.subr.bf16.mxu0 0
        %2061 = vmatpush1.bf16.msra.mxu0 %v2045
        %2062 = vmatprep.subr.bf16.mxu0 0
        %2063 = vmatpush1.bf16.msra.mxu0 0
        %2064 = vmatprep.subr.bf16.mxu0 0
        %2065 = vmatpush1.bf16.msra.mxu0 0
        %2066 = vmatprep.subr.bf16.mxu0 0
        %2067 = vmatpush1.bf16.msra.mxu0 0
        %2068 = vmatprep.subr.bf16.mxu0 0
        %2069 = vmatpush1.bf16.msra.mxu0 0
        %2070 = vmatprep.subr.bf16.mxu0 0
        %2071 = vmatpush1.bf16.msra.mxu0 0
        %2072 = vmatprep.subr.bf16.mxu0 0
        %2073 = vmatpush1.bf16.msra.mxu0 0
        %2074 = vmatprep.subr.bf16.mxu0 0
        %2075 = vmatpush1.bf16.msra.mxu0 0
        %2076 = vmatprep.subr.bf16.mxu0 0
        %2077 = vmatpush1.bf16.msra.mxu0 0
        %2078 = vmatprep.subr.bf16.mxu0 0
        %2079 = vmatpush1.bf16.msra.mxu0 0
        %2080 = vmatprep.subr.bf16.mxu0 0
        %2081 = vmatpush1.bf16.msra.mxu0 0
        %2082 = vmatprep.subr.bf16.mxu0 0
        %2083 = vmatpush1.bf16.msra.mxu0 0
        %2084 = vmatprep.subr.bf16.mxu0 0
        %2085 = vmatpush1.bf16.msra.mxu0 0
        %2086 = vmatprep.mubr.bf16.mxu0 0
        %2087 = vmatmul.mubr.bf16.gmra.mrb[0].mxu0 %v2052
        %v2088 = vpop.f32.mrb[0].mxu0
        %v2089 = vadd.f32 %v2025, %v2088
        %v2090 = vpop.f32.mrb[0].mxu0
        %v2091 = vpop.f32.mrb[0].mxu0
        %v2092 = vpop.f32.mrb[0].mxu0
        %2093 = vdwg.mxu0
        %v2094 = vadd.f32 %v2089, %v1943
        %v2095 = vsel %vm653, %v2094, 0.0
        %2096 = vadd.xlane.f32.xlu0 %v2095
        %v2097 = vpop.xlane.xlu0 %2096
        %v2098 = vmul.f32 %v2097, %v1235
        %v2099 = vsub.f32 %v2094, %v2098
        %v2100 = vmul.f32 %v2099, %v2099
        %v2101 = vsel %vm653, %v2100, 0.0
        %2102 = vadd.xlane.f32.xlu0 %v2101
        %v2103 = vpop.xlane.xlu0 %2102
        %v2104 = vmul.f32 %v2103, %v1235
        %v2105 = vld [vmem:[%s13 + $0x9] sm:$0x1]
        %v2106 = vadd.f32 %v2104, 1e-05
        %v2107 = vrsqrt.pop %v2106
        %v2108 = vmul.f32 %v2099, %v2107
        %v2109 = vlaneseq
        %v2110 = vshrl.u32 %v2109, 7
        %v2111 = vsub.s32 0, %v2110
        %v2112 = vrot.slane %v2105, %v2111
        %v2113 = vmul.f32 %v2112, %v2108
        %v2114 = vld [vmem:[%s13 + $0xa] sm:$0x1]
        %v2115 = vlaneseq
        %v2116 = vshrl.u32 %v2115, 7
        %v2117 = vsub.s32 0, %v2116
        %v2118 = vrot.slane %v2114, %v2117
        %v2119 = vadd.f32 %v2113, %v2118
        %2120 = vst.msk [vmem:[%s559] sm:$0xff] %vm653, %v2119
        %s2121 = sand.u32 %s344, 1
        %s2122 = scalar_lea.sflag [#allocation5], %s2121
        %s2123 = sand.u32 %s344, 1
        %s2124 = smul.addr %s2123, 8
        %s2125 = scalar_lea.vmem [#allocation14], %s2124
        // Predicated region
        $region101: #{tpu_custom_call.1} parent=75 // pred_check
          %p2126 = pneg %p354
        $region102: #{tpu_custom_call.1} parent=75 // pred_check_branch
          %2128 = sbr.rel (%p2126) target = $region104
        $region103: #{tpu_custom_call.1} parent=75 // pred_region
          %s2130 = ssub.s32 128, 128
          %2131 = vsyncadd %s2122, %s2130
          %s2132 = smul.addr %s32, 128
          %s2133 = scalar_lea.hbm %s14, %s2132
          %s2135 = sshll.u32 %s2125, 4
          %s2136 = int_to_ptr.vmem [resolvable:$true] %s2135
          %2138 = dma.vmem_to_hbm [thread:$0]  %s2136, 128, %s2133, %s2122
        $region104: #{tpu_custom_call.1} parent=75 // pred_fallthru
          _
      $region76: #{tpu_custom_call.1} parent=5 // pred_fallthru
        _
      %p2139 = scmp.le.s32.totalorder 2, %s27
      // Predicated region
      $region105: #{tpu_custom_call.1} parent=5 // pred_check
        %p2140 = pneg %p2139
      $region106: #{tpu_custom_call.1} parent=5 // pred_check_branch
        %2142 = sbr.rel (%p2140) target = $region108
      $region107: #{tpu_custom_call.1} parent=5 // pred_region
        %s2143 = ssub.s32 %s27, 2
        // Predicated region
        $region109: #{tpu_custom_call.1} parent=107 // pred_check
          %p2144 = pneg %p360
        $region110: #{tpu_custom_call.1} parent=107 // pred_check_branch
          %2146 = sbr.rel (%p2144) target = $region112
        $region111: #{tpu_custom_call.1} parent=107 // pred_region
          %s2147 = sand.u32 %s345, 1
          %s2148 = scalar_lea.sflag [#allocation5], %s2147
          %s2149 = sand.u32 %s345, 1
          %s2150 = smul.addr %s2149, 8
          %s2151 = scalar_lea.vmem [#allocation14], %s2150
          %2152 = dma.done %s2148, 128
        $region112: #{tpu_custom_call.1} parent=107 // pred_fallthru
          _
      $region108: #{tpu_custom_call.1} parent=5 // pred_fallthru
        _
    $region6: #{tpu_custom_call.1} parent=1 // loop_footer
      %s31 = sadd.s32 1, %s27
    $region7: #{tpu_custom_call.1} parent=1 // loop_footer_branch
      %26 = sbr.rel target = $region3
    $region8: #{tpu_custom_call.1} parent=1 // loop_exit
      _
    %2153 = vsyncpa [#allocation4], 1
    %s2154 = scalar_lea.sflag [#allocation4], 1
    %2155 = vsyncpa %s2154, 1
    %2156 = vsyncpa [#allocation7], 1
    %2157 = vsyncpa [#allocation10], 1
    %2158 = vsyncpa [#allocation13], 1
    %2159 = vsyncpa [#allocation5], 1
    %s2160 = scalar_lea.sflag [#allocation5], 1
    %2161 = vsyncpa %s2160, 1

</llo_original>
